<compile_context>
chip_gen: v7x
topology: tpu7x:2x2x1
jax: 0.10.0
libtpu: 0.0.40
codegen_flags: <defaults>
</compile_context>

<pallas_src>
import functools

import jax
import jax.numpy as jnp
from jax import lax
from jax.experimental import pallas as pl
from jax.experimental.pallas import tpu as pltpu


def _round_up(x, m):
    return ((x + m - 1) // m) * m


# ---------------- fused input projections (w1 | w2 | w3) -------------------- #
def _proj_kernel(x_ref, w_ref, b_ref, o_ref, *, h, r):
    y = jnp.dot(x_ref[...], w_ref[...], preferred_element_type=jnp.float32)
    y = y + b_ref[...]
    lane = lax.broadcasted_iota(jnp.int32, y.shape, 1)
    tanh_lanes = (lane >= h) & (lane < h + r)   # only the w2 (rank) columns get tanh
    o_ref[...] = jnp.where(tanh_lanes, jnp.tanh(y), y).astype(o_ref.dtype)


def fused_projections(x_pad, params, *, tn):
    n_pad, emb = x_pad.shape
    h = params["w1_w"].shape[1]
    r = params["w2_w"].shape[1]
    width = 2 * h + r
    wp = _round_up(width, 128)                  # lane-dense output slab

    # fold the implicit ones-column of [x, 1] into the w2 bias
    w2_x = params["w2_w"][:emb, :]
    b2_eff = params["w2_b"] + params["w2_w"][emb, :]

    w_cat = jnp.zeros((emb, wp), jnp.float32)
    w_cat = w_cat.at[:, :h].set(params["w1_w"])
    w_cat = w_cat.at[:, h:h + r].set(w2_x)
    w_cat = w_cat.at[:, h + r:width].set(params["w3_w"])
    b_cat = jnp.zeros((1, wp), jnp.float32)
    b_cat = b_cat.at[0, :h].set(params["w1_b"])
    b_cat = b_cat.at[0, h:h + r].set(b2_eff)
    b_cat = b_cat.at[0, h + r:width].set(params["w3_b"])

    slab = pl.pallas_call(
        functools.partial(_proj_kernel, h=h, r=r),
        grid=(n_pad // tn,),
        in_specs=[
            pl.BlockSpec((tn, emb), lambda i: (i, 0)),
            pl.BlockSpec((emb, wp), lambda i: (0, 0)),
            pl.BlockSpec((1, wp), lambda i: (0, 0)),
        ],
        out_specs=pl.BlockSpec((tn, wp), lambda i: (i, 0)),
        out_shape=jax.ShapeDtypeStruct((n_pad, wp), jnp.float32),
        compiler_params=pltpu.CompilerParams(dimension_semantics=("parallel",)),
    )(x_pad, w_cat, b_cat)

    x_sum = slab[:, :h]
    x_prod = slab[:, h:h + r]
    x_self = slab[:, h + r:width]
    return x_sum, x_prod, x_self


# --------------- scatter-sum (MXU) / scatter-product aggregation ------------ #
def _agg_kernel(col_ref, xs_ref, xp_ref, sum_ref, prod_ref):
    tn, h = sum_ref.shape
    te = col_ref.shape[1]
    r = xp_ref.shape[1]

    @pl.when(pl.program_id(1) == 0)
    def _():
        sum_ref[...] = jnp.zeros((tn, h), jnp.float32)
        prod_ref[...] = jnp.ones((tn, r), jnp.float32)

    col = col_ref[...]                                               # [1, TE] int32
    tids = pl.program_id(0) * tn + lax.broadcasted_iota(jnp.int32, (tn, te), 0)
    mask = col == tids                                               # [TN, TE]

    # scatter-sum on the MXU: one-hot adjacency block @ gathered source features
    sum_ref[...] += jnp.dot(mask.astype(jnp.float32), xs_ref[...],
                            preferred_element_type=jnp.float32)

    # scatter-product: register-resident select-multiply, one store per target block
    xp = xp_ref[...]                                                 # [TE, R]
    part = jnp.ones((tn, r), jnp.float32)
    for k in range(te):                                              # static unroll
        part = part * jnp.where(mask[:, k:k + 1], xp[k:k + 1, :], 1.0)
    prod_ref[...] *= part


def aggregate(col, xs_e, xp_e, *, n_pad, tn):
    e = col.shape[0]
    h = xs_e.shape[1]
    r = xp_e.shape[1]
    # TODO(synk): for very large sparse graphs, sort edges by target and scalar-prefetch
    # per-target-block edge ranges so empty edge blocks can be skipped (CSR-style).
    if e <= 128:
        te = _round_up(e, 8)
    else:
        te = 128
    e_pad = _round_up(e, te)

    col_p = jnp.full((1, e_pad), -1, jnp.int32).at[0, :e].set(col)   # -1 never matches
    xs_p = jnp.zeros((e_pad, h), jnp.float32).at[:e, :].set(xs_e)
    xp_p = jnp.ones((e_pad, r), jnp.float32).at[:e, :].set(xp_e)

    grid = (n_pad // tn, e_pad // te)
    bytes_accessed = 4 * (grid[0] * e_pad * (h + r + 1) + n_pad * (h + r))
    return pl.pallas_call(
        _agg_kernel,
        grid=grid,
        in_specs=[
            pl.BlockSpec((1, te), lambda i, eb: (0, eb)),
            pl.BlockSpec((te, h), lambda i, eb: (eb, 0)),
            pl.BlockSpec((te, r), lambda i, eb: (eb, 0)),
        ],
        out_specs=[
            pl.BlockSpec((tn, h), lambda i, eb: (i, 0)),
            pl.BlockSpec((tn, r), lambda i, eb: (i, 0)),
        ],
        out_shape=(
            jax.ShapeDtypeStruct((n_pad, h), jnp.float32),
            jax.ShapeDtypeStruct((n_pad, r), jnp.float32),
        ),
        compiler_params=pltpu.CompilerParams(
            dimension_semantics=("parallel", "arbitrary")),
        cost_estimate=pl.CostEstimate(
            flops=2 * n_pad * e_pad * h + n_pad * e_pad * r,
            transcendentals=0,
            bytes_accessed=bytes_accessed),
    )(col_p, xs_p, xp_p)


# --------------- fused v-projection + 3-way attention mix ------------------- #
def _attn_kernel(pr_ref, s_ref, i_ref, vw_ref, vb_ref, a1_ref, a2_ref, a3_ref,
                 av_ref, o_ref):
    prod = jnp.dot(pr_ref[...], vw_ref[...],
                   preferred_element_type=jnp.float32) + vb_ref[...]
    summ = s_ref[...]
    iden = i_ref[...]
    # attention scores on the MXU ([tile, h] @ [h, 1]) instead of VPU mul + XLU reduce
    s1 = jax.nn.sigmoid(jnp.dot(prod, a1_ref[...], preferred_element_type=jnp.float32))
    s2 = jax.nn.sigmoid(jnp.dot(summ, a2_ref[...], preferred_element_type=jnp.float32))
    s3 = jax.nn.sigmoid(jnp.dot(iden, a3_ref[...], preferred_element_type=jnp.float32))
    inv_t = 1.0 / 3.0  # temperature T = 3
    # att_vec is Linear(3, 3, bias=False): logits[:, k] = sum_j sig[:, j] * W[k, j]
    logits = [(s1 * av_ref[k, 0] + s2 * av_ref[k, 1] + s3 * av_ref[k, 2]) * inv_t
              for k in range(3)]
    m = jnp.maximum(jnp.maximum(logits[0], logits[1]), logits[2])
    e0 = jnp.exp(logits[0] - m)
    e1 = jnp.exp(logits[1] - m)
    e2 = jnp.exp(logits[2] - m)
    denom = e0 + e1 + e2
    o_ref[...] = ((e0 * prod + e1 * summ + e2 * iden) / denom).astype(o_ref.dtype)


def v_and_attention(prod_raw, sum_agg, x_self, params, *, tn):
    n_pad, r = prod_raw.shape
    h = sum_agg.shape[1]

    def row_spec(feat):
        return pl.BlockSpec((tn, feat), lambda i: (i, 0))

    def full_spec(shape):
        return pl.BlockSpec(shape, lambda i: (0, 0))

    return pl.pallas_call(
        _attn_kernel,
        grid=(n_pad // tn,),
        in_specs=[
            row_spec(r),                        # prod aggregation (pre v-projection)
            row_spec(h),                        # sum aggregation
            row_spec(h),                        # x_self
            full_spec((r, h)),                  # v_w
            full_spec((1, h)),                  # v_b
            full_spec((h, 1)),                  # att1
            full_spec((h, 1)),                  # att2
            full_spec((h, 1)),                  # att3
            pl.BlockSpec(memory_space=pltpu.MemorySpace.SMEM),   # att_vec 3x3 scalars
        ],
        out_specs=row_spec(h),
        out_shape=jax.ShapeDtypeStruct((n_pad, h), jnp.float32),
        compiler_params=pltpu.CompilerParams(dimension_semantics=("parallel",)),
    )(prod_raw, sum_agg, x_self,
      params["v_w"], params["v_b"].reshape(1, -1),
      params["att1_w"], params["att2_w"], params["att3_w"],
      params["att_vec_w"])


# -------------------------------- Forward ----------------------------------- #
def gcn_conv_forward(params, x, edge_index, num_nodes, *, tile_n=256):
    n = num_nodes
    row = edge_index[0].astype(jnp.int32)
    col = edge_index[1].astype(jnp.int32)

    tn = min(tile_n, _round_up(n, 8))
    n_pad = _round_up(n, tn)
    x_pad = jnp.zeros((n_pad, x.shape[1]), jnp.float32).at[:n, :].set(x)

    # 1) fused projections (ones column folded into w2 bias, lane-dense output slab)
    x_sum, x_prod, x_self = fused_projections(x_pad, params, tn=tn)

    # 2) per-edge gather of source features hoisted out of the kernel (XLA gather)
    xs_e = jnp.take(x_sum, row, axis=0)
    xp_e = jnp.take(x_prod, row, axis=0)

    # 3) scatter-sum (MXU one-hot matmul) + scatter-product (vectorized select)
    sum_agg, prod_raw = aggregate(col, xs_e, xp_e, n_pad=n_pad, tn=tn)

    # 4) fused v-projection + 3-way attention mix
    rst = v_and_attention(prod_raw, sum_agg, x_self, params, tn=tn)
    return rst[:n]


# ------------------------------ Param init ----------------------------------- #
def init_params(key, emb_dim, hidden_dim, rank_dim):
    def lin(k, fan_in, fan_out):
        kw, kb = jax.random.split(k)
        bound = 1.0 / (fan_in ** 0.5)
        w = jax.random.uniform(kw, (fan_in, fan_out), jnp.float32, -bound, bound)
        b = jax.random.uniform(kb, (fan_out,), jnp.float32, -bound, bound)
        return w, b

    keys = jax.random.split(key, 8)
    w1_w, w1_b = lin(keys[0], emb_dim, hidden_dim)
    w2_w, w2_b = lin(keys[1], emb_dim + 1, rank_dim)
    w3_w, w3_b = lin(keys[2], emb_dim, hidden_dim)
    v_w, v_b = lin(keys[3], rank_dim, hidden_dim)
    att1_w, _ = lin(keys[4], hidden_dim, 1)
    att2_w, _ = lin(keys[5], hidden_dim, 1)
    att3_w, _ = lin(keys[6], hidden_dim, 1)
    bound3 = 1.0 / (3.0 ** 0.5)
    att_vec_w = jax.random.uniform(keys[7], (3, 3), jnp.float32, -bound3, bound3)
    # TODO(synk): root_emb (Embedding(1, hidden_dim)) is unused in forward; not materialized.
    return dict(
        w1_w=w1_w, w1_b=w1_b,
        w2_w=w2_w, w2_b=w2_b,
        w3_w=w3_w, w3_b=w3_b,
        v_w=v_w, v_b=v_b,
        att1_w=att1_w, att2_w=att2_w, att3_w=att3_w,   # stored as [hidden, 1]
        att_vec_w=att_vec_w,                            # [out=3, in=3] like PyTorch
    )


# --------------------------- Pure-JAX reference ------------------------------ #
def reference(params, x, edge_index, num_nodes):
    row, col = edge_index[0], edge_index[1]
    ones = jnp.ones((x.shape[0], 1), x.dtype)
    x_sum = x @ params["w1_w"] + params["w1_b"]
    x_prod = jnp.tanh(jnp.concatenate([x, ones], 1) @ params["w2_w"] + params["w2_b"])
    x_self = x @ params["w3_w"] + params["w3_b"]
    sum_agg = jax.ops.segment_sum(x_sum[row], col, num_segments=num_nodes)
    prod_agg = jax.ops.segment_prod(x_prod[row], col, num_segments=num_nodes)
    prod_agg = prod_agg @ params["v_w"] + params["v_b"]
    a1 = prod_agg @ params["att1_w"]
    a2 = sum_agg @ params["att2_w"]
    a3 = x_self @ params["att3_w"]
    sig = jax.nn.sigmoid(jnp.concatenate([a1, a2, a3], 1))
    att = jax.nn.softmax((sig @ params["att_vec_w"].T) / 3.0, axis=1)
    return att[:, 0:1] * prod_agg + att[:, 1:2] * sum_agg + att[:, 2:3] * x_self


if __name__ == "__main__":
    N, E = 16, 32
    emb_dim, hidden_dim, rank_dim = 8, 32, 16

    key = jax.random.PRNGKey(0)
    k_p, k_x, k_r = jax.random.split(key, 3)
    params = init_params(k_p, emb_dim, hidden_dim, rank_dim)
    x = jax.random.normal(k_x, (N, emb_dim), jnp.float32)
    row = jax.random.randint(k_r, (E,), 0, N, dtype=jnp.int32)
    col = (jnp.arange(E, dtype=jnp.int32) % N)   # every node is a target
    edge_index = jnp.stack([row, col])

    forward = jax.jit(functools.partial(gcn_conv_forward, num_nodes=N))
    out = forward(params, x, edge_index)
    out = jax.block_until_ready(out)

    ref = reference(params, x, edge_index, N)
    assert out.shape == (N, hidden_dim)
    err = float(jnp.max(jnp.abs(out - ref)))
    assert jnp.allclose(out, ref, atol=1e-4, rtol=1e-4), err
    print("KERNEL_OK")
</pallas_src>

<mosaic_0001>
module attributes {stable_mosaic.version = 11 : i64} {
  func.func @_proj_kernel(%arg0: i32, %arg1: memref<16x8xf32, #tpu.memory_space<vmem>>, %arg2: memref<8x128xf32, #tpu.memory_space<vmem>>, %arg3: memref<1x128xf32, #tpu.memory_space<vmem>>, %arg4: memref<16x128xf32, #tpu.memory_space<vmem>>) attributes {dimension_semantics = [#tpu.dimension_semantics<parallel>], iteration_bounds = array<i64: 1>, scalar_prefetch = 0 : i64, scratch_operands = 0 : i64, tpu.core_type = #tpu.core_type<tc>, window_params = [{transform_indices = @transform_0, window_bounds = array<i64: 16, 8>}, {pipeline_mode = #tpu.pipeline_mode<synchronous>, transform_indices = @transform_1, window_bounds = array<i64: 8, 128>}, {pipeline_mode = #tpu.pipeline_mode<synchronous>, transform_indices = @transform_2, window_bounds = array<i64: 1, 128>}, {transform_indices = @transform_3, window_bounds = array<i64: 16, 128>}]} {
    %c0 = arith.constant 0 : index
    %c0_0 = arith.constant 0 : index
    %0 = vector.load %arg1[%c0, %c0_0] : memref<16x8xf32, #tpu.memory_space<vmem>>, vector<16x8xf32>
    %c0_1 = arith.constant 0 : index
    %c0_2 = arith.constant 0 : index
    %1 = vector.load %arg2[%c0_1, %c0_2] : memref<8x128xf32, #tpu.memory_space<vmem>>, vector<8x128xf32>
    %cst = arith.constant dense<0.000000e+00> : vector<16x128xf32>
    %2 = tpu.matmul %0, %1, %cst {dimension_numbers = #tpu.dot_dimension_numbers<[1], [0], [0], [1], [0, 0, 1, 1], [], []>} : vector<16x8xf32>, vector<8x128xf32>, vector<16x128xf32> -> vector<16x128xf32>
    %c0_3 = arith.constant 0 : index
    %c0_4 = arith.constant 0 : index
    %3 = vector.load %arg3[%c0_3, %c0_4] : memref<1x128xf32, #tpu.memory_space<vmem>>, vector<1x128xf32>
    %4 = vector.broadcast %3 : vector<1x128xf32> to vector<16x128xf32>
    %5 = arith.addf %2, %4 : vector<16x128xf32>
    %6 = tpu.iota {dimensions = array<i32: 1>} : vector<16x128xi32>
    %c32_i32 = arith.constant 32 : i32
    %7 = vector.broadcast %c32_i32 : i32 to vector<16x128xi32>
    %8 = arith.cmpi sge, %6, %7 : vector<16x128xi32>
    %c48_i32 = arith.constant 48 : i32
    %9 = vector.broadcast %c48_i32 : i32 to vector<16x128xi32>
    %10 = arith.cmpi slt, %6, %9 : vector<16x128xi32>
    %11 = arith.andi %8, %10 : vector<16x128xi1>
    %12 = math.tanh %5 : vector<16x128xf32>
    %13 = arith.select %11, %12, %5 : vector<16x128xi1>, vector<16x128xf32>
    %c0_5 = arith.constant 0 : index
    %c0_6 = arith.constant 0 : index
    %14 = vector.load %arg4[%c0_5, %c0_6] : memref<16x128xf32, #tpu.memory_space<vmem>>, vector<16x128xf32>
    tpu.vector_store %arg4[%c0_5, %c0_6], %13 {strides = array<i32>} : memref<16x128xf32, #tpu.memory_space<vmem>>, vector<16x128xf32>,
    return
  }
  func.func @transform_0(%arg0: i32) -> (i32, i32) {
    %c0_i32 = arith.constant 0 : i32
    %c0_i32_0 = arith.constant 0 : i32
    return %arg0, %c0_i32 : i32, i32
  }
  func.func @transform_1(%arg0: i32) -> (i32, i32) {
    %c0_i32 = arith.constant 0 : i32
    %c0_i32_0 = arith.constant 0 : i32
    %c0_i32_1 = arith.constant 0 : i32
    return %c0_i32, %c0_i32_0 : i32, i32
  }
  func.func @transform_2(%arg0: i32) -> (i32, i32) {
    %c0_i32 = arith.constant 0 : i32
    %c0_i32_0 = arith.constant 0 : i32
    %c0_i32_1 = arith.constant 0 : i32
    return %c0_i32, %c0_i32_0 : i32, i32
  }
  func.func @transform_3(%arg0: i32) -> (i32, i32) {
    %c0_i32 = arith.constant 0 : i32
    %c0_i32_0 = arith.constant 0 : i32
    return %arg0, %c0_i32 : i32, i32
  }
}

module attributes {stable_mosaic.version = 11 : i64} {
  func.func @_agg_kernel(%arg0: i32, %arg1: i32, %arg2: memref<1x32xi32, #tpu.memory_space<vmem>>, %arg3: memref<32x32xf32, #tpu.memory_space<vmem>>, %arg4: memref<32x16xf32, #tpu.memory_space<vmem>>, %arg5: memref<16x32xf32, #tpu.memory_space<vmem>>, %arg6: memref<16x16xf32, #tpu.memory_space<vmem>>) attributes {dimension_semantics = [#tpu.dimension_semantics<parallel>, #tpu.dimension_semantics<arbitrary>], iteration_bounds = array<i64: 1, 1>, scalar_prefetch = 0 : i64, scratch_operands = 0 : i64, tpu.core_type = #tpu.core_type<tc>, window_params = [{transform_indices = @transform_0, window_bounds = array<i64: 1, 32>}, {transform_indices = @transform_1, window_bounds = array<i64: 32, 32>}, {transform_indices = @transform_2, window_bounds = array<i64: 32, 16>}, {transform_indices = @transform_3, window_bounds = array<i64: 16, 32>}, {transform_indices = @transform_4, window_bounds = array<i64: 16, 16>}]} {
    %c0_i32 = arith.constant 0 : i32
    %0 = arith.cmpi eq, %arg1, %c0_i32 : i32
    %1 = arith.extui %0 : i1 to i32
    %c0_i32_0 = arith.constant 0 : i32
    %2 = arith.cmpi ne, %1, %c0_i32_0 : i32
    scf.if %2 {
      %cst_47 = arith.constant 0.000000e+00 : f32
      %310 = vector.broadcast %cst_47 : f32 to vector<16x32xf32>
      %c0_48 = arith.constant 0 : index
      %c0_49 = arith.constant 0 : index
      %311 = vector.load %arg5[%c0_48, %c0_49] : memref<16x32xf32, #tpu.memory_space<vmem>>, vector<16x32xf32>
      tpu.vector_store %arg5[%c0_48, %c0_49], %310 {strides = array<i32>} : memref<16x32xf32, #tpu.memory_space<vmem>>, vector<16x32xf32>,
      %cst_50 = arith.constant 1.000000e+00 : f32
      %312 = vector.broadcast %cst_50 : f32 to vector<16x16xf32>
      %c0_51 = arith.constant 0 : index
      %c0_52 = arith.constant 0 : index
      %313 = vector.load %arg6[%c0_51, %c0_52] : memref<16x16xf32, #tpu.memory_space<vmem>>, vector<16x16xf32>
      tpu.vector_store %arg6[%c0_51, %c0_52], %312 {strides = array<i32>} : memref<16x16xf32, #tpu.memory_space<vmem>>, vector<16x16xf32>,
    } else {
    }
    %c0 = arith.constant 0 : index
    %c0_1 = arith.constant 0 : index
    %3 = vector.load %arg2[%c0, %c0_1] : memref<1x32xi32, #tpu.memory_space<vmem>>, vector<1x32xi32>
    %c16_i32 = arith.constant 16 : i32
    %4 = arith.muli %arg0, %c16_i32 : i32
    %5 = tpu.iota {dimensions = array<i32: 0>} : vector<16x32xi32>
    %6 = vector.broadcast %4 : i32 to vector<16x32xi32>
    %7 = arith.addi %6, %5 : vector<16x32xi32>
    %8 = vector.broadcast %3 : vector<1x32xi32> to vector<16x32xi32>
    %9 = arith.cmpi eq, %8, %7 : vector<16x32xi32>
    %c0_2 = arith.constant 0 : index
    %c0_3 = arith.constant 0 : index
    %10 = vector.load %arg5[%c0_2, %c0_3] : memref<16x32xf32, #tpu.memory_space<vmem>>, vector<16x32xf32>
    %11 = arith.extui %9 : vector<16x32xi1> to vector<16x32xi32>
    %12 = arith.sitofp %11 : vector<16x32xi32> to vector<16x32xf32>
    %c0_4 = arith.constant 0 : index
    %c0_5 = arith.constant 0 : index
    %13 = vector.load %arg3[%c0_4, %c0_5] : memref<32x32xf32, #tpu.memory_space<vmem>>, vector<32x32xf32>
    %cst = arith.constant dense<0.000000e+00> : vector<16x32xf32>
    %14 = tpu.matmul %12, %13, %cst {dimension_numbers = #tpu.dot_dimension_numbers<[1], [0], [0], [1], [0, 0, 1, 1], [], []>} : vector<16x32xf32>, vector<32x32xf32>, vector<16x32xf32> -> vector<16x32xf32>
    %15 = arith.addf %10, %14 : vector<16x32xf32>
    %c0_6 = arith.constant 0 : index
    %c0_7 = arith.constant 0 : index
    %16 = vector.load %arg5[%c0_6, %c0_7] : memref<16x32xf32, #tpu.memory_space<vmem>>, vector<16x32xf32>
    tpu.vector_store %arg5[%c0_6, %c0_7], %15 {strides = array<i32>} : memref<16x32xf32, #tpu.memory_space<vmem>>, vector<16x32xf32>,
    %c0_8 = arith.constant 0 : index
    %c0_9 = arith.constant 0 : index
    %17 = vector.load %arg4[%c0_8, %c0_9] : memref<32x16xf32, #tpu.memory_space<vmem>>, vector<32x16xf32>
    %cst_10 = arith.constant 1.000000e+00 : f32
    %18 = vector.broadcast %cst_10 : f32 to vector<16x16xf32>
    %19 = vector.extract_strided_slice %9 {offsets = [0, 0], sizes = [16, 1], strides = [1, 1]} : vector<16x32xi1> to vector<16x1xi1>
    %20 = vector.extract_strided_slice %17 {offsets = [0, 0], sizes = [1, 16], strides = [1, 1]} : vector<32x16xf32> to vector<1x16xf32>
    %cst_11 = arith.constant 1.000000e+00 : f32
    %21 = vector.shape_cast %19 : vector<16x1xi1> to vector<16x1xi1>
    %22 = vector.broadcast %21 : vector<16x1xi1> to vector<16x16xi1>
    %23 = vector.shape_cast %20 : vector<1x16xf32> to vector<1x16xf32>
    %24 = vector.broadcast %23 : vector<1x16xf32> to vector<16x16xf32>
    %25 = vector.broadcast %cst_11 : f32 to vector<16x16xf32>
    %26 = arith.select %22, %24, %25 : vector<16x16xi1>, vector<16x16xf32>
    %27 = arith.mulf %18, %26 : vector<16x16xf32>
    %28 = vector.extract_strided_slice %9 {offsets = [0, 1], sizes = [16, 1], strides = [1, 1]} : vector<16x32xi1> to vector<16x1xi1>
    %29 = vector.extract_strided_slice %17 {offsets = [1, 0], sizes = [1, 16], strides = [1, 1]} : vector<32x16xf32> to vector<1x16xf32>
    %cst_12 = arith.constant 1.000000e+00 : f32
    %30 = vector.shape_cast %28 : vector<16x1xi1> to vector<16x1xi1>
    %31 = vector.broadcast %30 : vector<16x1xi1> to vector<16x16xi1>
    %32 = vector.shape_cast %29 : vector<1x16xf32> to vector<1x16xf32>
    %33 = vector.broadcast %32 : vector<1x16xf32> to vector<16x16xf32>
    %34 = vector.broadcast %cst_12 : f32 to vector<16x16xf32>
    %35 = arith.select %31, %33, %34 : vector<16x16xi1>, vector<16x16xf32>
    %36 = arith.mulf %27, %35 : vector<16x16xf32>
    %37 = vector.extract_strided_slice %9 {offsets = [0, 2], sizes = [16, 1], strides = [1, 1]} : vector<16x32xi1> to vector<16x1xi1>
    %38 = vector.extract_strided_slice %17 {offsets = [2, 0], sizes = [1, 16], strides = [1, 1]} : vector<32x16xf32> to vector<1x16xf32>
    %cst_13 = arith.constant 1.000000e+00 : f32
    %39 = vector.shape_cast %37 : vector<16x1xi1> to vector<16x1xi1>
    %40 = vector.broadcast %39 : vector<16x1xi1> to vector<16x16xi1>
    %41 = vector.shape_cast %38 : vector<1x16xf32> to vector<1x16xf32>
    %42 = vector.broadcast %41 : vector<1x16xf32> to vector<16x16xf32>
    %43 = vector.broadcast %cst_13 : f32 to vector<16x16xf32>
    %44 = arith.select %40, %42, %43 : vector<16x16xi1>, vector<16x16xf32>
    %45 = arith.mulf %36, %44 : vector<16x16xf32>
    %46 = vector.extract_strided_slice %9 {offsets = [0, 3], sizes = [16, 1], strides = [1, 1]} : vector<16x32xi1> to vector<16x1xi1>
    %47 = vector.extract_strided_slice %17 {offsets = [3, 0], sizes = [1, 16], strides = [1, 1]} : vector<32x16xf32> to vector<1x16xf32>
    %cst_14 = arith.constant 1.000000e+00 : f32
    %48 = vector.shape_cast %46 : vector<16x1xi1> to vector<16x1xi1>
    %49 = vector.broadcast %48 : vector<16x1xi1> to vector<16x16xi1>
    %50 = vector.shape_cast %47 : vector<1x16xf32> to vector<1x16xf32>
    %51 = vector.broadcast %50 : vector<1x16xf32> to vector<16x16xf32>
    %52 = vector.broadcast %cst_14 : f32 to vector<16x16xf32>
    %53 = arith.select %49, %51, %52 : vector<16x16xi1>, vector<16x16xf32>
    %54 = arith.mulf %45, %53 : vector<16x16xf32>
    %55 = vector.extract_strided_slice %9 {offsets = [0, 4], sizes = [16, 1], strides = [1, 1]} : vector<16x32xi1> to vector<16x1xi1>
    %56 = vector.extract_strided_slice %17 {offsets = [4, 0], sizes = [1, 16], strides = [1, 1]} : vector<32x16xf32> to vector<1x16xf32>
    %cst_15 = arith.constant 1.000000e+00 : f32
    %57 = vector.shape_cast %55 : vector<16x1xi1> to vector<16x1xi1>
    %58 = vector.broadcast %57 : vector<16x1xi1> to vector<16x16xi1>
    %59 = vector.shape_cast %56 : vector<1x16xf32> to vector<1x16xf32>
    %60 = vector.broadcast %59 : vector<1x16xf32> to vector<16x16xf32>
    %61 = vector.broadcast %cst_15 : f32 to vector<16x16xf32>
    %62 = arith.select %58, %60, %61 : vector<16x16xi1>, vector<16x16xf32>
    %63 = arith.mulf %54, %62 : vector<16x16xf32>
    %64 = vector.extract_strided_slice %9 {offsets = [0, 5], sizes = [16, 1], strides = [1, 1]} : vector<16x32xi1> to vector<16x1xi1>
    %65 = vector.extract_strided_slice %17 {offsets = [5, 0], sizes = [1, 16], strides = [1, 1]} : vector<32x16xf32> to vector<1x16xf32>
    %cst_16 = arith.constant 1.000000e+00 : f32
    %66 = vector.shape_cast %64 : vector<16x1xi1> to vector<16x1xi1>
    %67 = vector.broadcast %66 : vector<16x1xi1> to vector<16x16xi1>
    %68 = vector.shape_cast %65 : vector<1x16xf32> to vector<1x16xf32>
    %69 = vector.broadcast %68 : vector<1x16xf32> to vector<16x16xf32>
    %70 = vector.broadcast %cst_16 : f32 to vector<16x16xf32>
    %71 = arith.select %67, %69, %70 : vector<16x16xi1>, vector<16x16xf32>
    %72 = arith.mulf %63, %71 : vector<16x16xf32>
    %73 = vector.extract_strided_slice %9 {offsets = [0, 6], sizes = [16, 1], strides = [1, 1]} : vector<16x32xi1> to vector<16x1xi1>
    %74 = vector.extract_strided_slice %17 {offsets = [6, 0], sizes = [1, 16], strides = [1, 1]} : vector<32x16xf32> to vector<1x16xf32>
    %cst_17 = arith.constant 1.000000e+00 : f32
    %75 = vector.shape_cast %73 : vector<16x1xi1> to vector<16x1xi1>
    %76 = vector.broadcast %75 : vector<16x1xi1> to vector<16x16xi1>
    %77 = vector.shape_cast %74 : vector<1x16xf32> to vector<1x16xf32>
    %78 = vector.broadcast %77 : vector<1x16xf32> to vector<16x16xf32>
    %79 = vector.broadcast %cst_17 : f32 to vector<16x16xf32>
    %80 = arith.select %76, %78, %79 : vector<16x16xi1>, vector<16x16xf32>
    %81 = arith.mulf %72, %80 : vector<16x16xf32>
    %82 = vector.extract_strided_slice %9 {offsets = [0, 7], sizes = [16, 1], strides = [1, 1]} : vector<16x32xi1> to vector<16x1xi1>
    %83 = vector.extract_strided_slice %17 {offsets = [7, 0], sizes = [1, 16], strides = [1, 1]} : vector<32x16xf32> to vector<1x16xf32>
    %cst_18 = arith.constant 1.000000e+00 : f32
    %84 = vector.shape_cast %82 : vector<16x1xi1> to vector<16x1xi1>
    %85 = vector.broadcast %84 : vector<16x1xi1> to vector<16x16xi1>
    %86 = vector.shape_cast %83 : vector<1x16xf32> to vector<1x16xf32>
    %87 = vector.broadcast %86 : vector<1x16xf32> to vector<16x16xf32>
    %88 = vector.broadcast %cst_18 : f32 to vector<16x16xf32>
    %89 = arith.select %85, %87, %88 : vector<16x16xi1>, vector<16x16xf32>
    %90 = arith.mulf %81, %89 : vector<16x16xf32>
    %91 = vector.extract_strided_slice %9 {offsets = [0, 8], sizes = [16, 1], strides = [1, 1]} : vector<16x32xi1> to vector<16x1xi1>
    %92 = vector.extract_strided_slice %17 {offsets = [8, 0], sizes = [1, 16], strides = [1, 1]} : vector<32x16xf32> to vector<1x16xf32>
    %cst_19 = arith.constant 1.000000e+00 : f32
    %93 = vector.shape_cast %91 : vector<16x1xi1> to vector<16x1xi1>
    %94 = vector.broadcast %93 : vector<16x1xi1> to vector<16x16xi1>
    %95 = vector.shape_cast %92 : vector<1x16xf32> to vector<1x16xf32>
    %96 = vector.broadcast %95 : vector<1x16xf32> to vector<16x16xf32>
    %97 = vector.broadcast %cst_19 : f32 to vector<16x16xf32>
    %98 = arith.select %94, %96, %97 : vector<16x16xi1>, vector<16x16xf32>
    %99 = arith.mulf %90, %98 : vector<16x16xf32>
    %100 = vector.extract_strided_slice %9 {offsets = [0, 9], sizes = [16, 1], strides = [1, 1]} : vector<16x32xi1> to vector<16x1xi1>
    %101 = vector.extract_strided_slice %17 {offsets = [9, 0], sizes = [1, 16], strides = [1, 1]} : vector<32x16xf32> to vector<1x16xf32>
    %cst_20 = arith.constant 1.000000e+00 : f32
    %102 = vector.shape_cast %100 : vector<16x1xi1> to vector<16x1xi1>
    %103 = vector.broadcast %102 : vector<16x1xi1> to vector<16x16xi1>
    %104 = vector.shape_cast %101 : vector<1x16xf32> to vector<1x16xf32>
    %105 = vector.broadcast %104 : vector<1x16xf32> to vector<16x16xf32>
    %106 = vector.broadcast %cst_20 : f32 to vector<16x16xf32>
    %107 = arith.select %103, %105, %106 : vector<16x16xi1>, vector<16x16xf32>
    %108 = arith.mulf %99, %107 : vector<16x16xf32>
    %109 = vector.extract_strided_slice %9 {offsets = [0, 10], sizes = [16, 1], strides = [1, 1]} : vector<16x32xi1> to vector<16x1xi1>
    %110 = vector.extract_strided_slice %17 {offsets = [10, 0], sizes = [1, 16], strides = [1, 1]} : vector<32x16xf32> to vector<1x16xf32>
    %cst_21 = arith.constant 1.000000e+00 : f32
    %111 = vector.shape_cast %109 : vector<16x1xi1> to vector<16x1xi1>
    %112 = vector.broadcast %111 : vector<16x1xi1> to vector<16x16xi1>
    %113 = vector.shape_cast %110 : vector<1x16xf32> to vector<1x16xf32>
    %114 = vector.broadcast %113 : vector<1x16xf32> to vector<16x16xf32>
    %115 = vector.broadcast %cst_21 : f32 to vector<16x16xf32>
    %116 = arith.select %112, %114, %115 : vector<16x16xi1>, vector<16x16xf32>
    %117 = arith.mulf %108, %116 : vector<16x16xf32>
    %118 = vector.extract_strided_slice %9 {offsets = [0, 11], sizes = [16, 1], strides = [1, 1]} : vector<16x32xi1> to vector<16x1xi1>
    %119 = vector.extract_strided_slice %17 {offsets = [11, 0], sizes = [1, 16], strides = [1, 1]} : vector<32x16xf32> to vector<1x16xf32>
    %cst_22 = arith.constant 1.000000e+00 : f32
    %120 = vector.shape_cast %118 : vector<16x1xi1> to vector<16x1xi1>
    %121 = vector.broadcast %120 : vector<16x1xi1> to vector<16x16xi1>
    %122 = vector.shape_cast %119 : vector<1x16xf32> to vector<1x16xf32>
    %123 = vector.broadcast %122 : vector<1x16xf32> to vector<16x16xf32>
    %124 = vector.broadcast %cst_22 : f32 to vector<16x16xf32>
    %125 = arith.select %121, %123, %124 : vector<16x16xi1>, vector<16x16xf32>
    %126 = arith.mulf %117, %125 : vector<16x16xf32>
    %127 = vector.extract_strided_slice %9 {offsets = [0, 12], sizes = [16, 1], strides = [1, 1]} : vector<16x32xi1> to vector<16x1xi1>
    %128 = vector.extract_strided_slice %17 {offsets = [12, 0], sizes = [1, 16], strides = [1, 1]} : vector<32x16xf32> to vector<1x16xf32>
    %cst_23 = arith.constant 1.000000e+00 : f32
    %129 = vector.shape_cast %127 : vector<16x1xi1> to vector<16x1xi1>
    %130 = vector.broadcast %129 : vector<16x1xi1> to vector<16x16xi1>
    %131 = vector.shape_cast %128 : vector<1x16xf32> to vector<1x16xf32>
    %132 = vector.broadcast %131 : vector<1x16xf32> to vector<16x16xf32>
    %133 = vector.broadcast %cst_23 : f32 to vector<16x16xf32>
    %134 = arith.select %130, %132, %133 : vector<16x16xi1>, vector<16x16xf32>
    %135 = arith.mulf %126, %134 : vector<16x16xf32>
    %136 = vector.extract_strided_slice %9 {offsets = [0, 13], sizes = [16, 1], strides = [1, 1]} : vector<16x32xi1> to vector<16x1xi1>
    %137 = vector.extract_strided_slice %17 {offsets = [13, 0], sizes = [1, 16], strides = [1, 1]} : vector<32x16xf32> to vector<1x16xf32>
    %cst_24 = arith.constant 1.000000e+00 : f32
    %138 = vector.shape_cast %136 : vector<16x1xi1> to vector<16x1xi1>
    %139 = vector.broadcast %138 : vector<16x1xi1> to vector<16x16xi1>
    %140 = vector.shape_cast %137 : vector<1x16xf32> to vector<1x16xf32>
    %141 = vector.broadcast %140 : vector<1x16xf32> to vector<16x16xf32>
    %142 = vector.broadcast %cst_24 : f32 to vector<16x16xf32>
    %143 = arith.select %139, %141, %142 : vector<16x16xi1>, vector<16x16xf32>
    %144 = arith.mulf %135, %143 : vector<16x16xf32>
    %145 = vector.extract_strided_slice %9 {offsets = [0, 14], sizes = [16, 1], strides = [1, 1]} : vector<16x32xi1> to vector<16x1xi1>
    %146 = vector.extract_strided_slice %17 {offsets = [14, 0], sizes = [1, 16], strides = [1, 1]} : vector<32x16xf32> to vector<1x16xf32>
    %cst_25 = arith.constant 1.000000e+00 : f32
    %147 = vector.shape_cast %145 : vector<16x1xi1> to vector<16x1xi1>
    %148 = vector.broadcast %147 : vector<16x1xi1> to vector<16x16xi1>
    %149 = vector.shape_cast %146 : vector<1x16xf32> to vector<1x16xf32>
    %150 = vector.broadcast %149 : vector<1x16xf32> to vector<16x16xf32>
    %151 = vector.broadcast %cst_25 : f32 to vector<16x16xf32>
    %152 = arith.select %148, %150, %151 : vector<16x16xi1>, vector<16x16xf32>
    %153 = arith.mulf %144, %152 : vector<16x16xf32>
    %154 = vector.extract_strided_slice %9 {offsets = [0, 15], sizes = [16, 1], strides = [1, 1]} : vector<16x32xi1> to vector<16x1xi1>
    %155 = vector.extract_strided_slice %17 {offsets = [15, 0], sizes = [1, 16], strides = [1, 1]} : vector<32x16xf32> to vector<1x16xf32>
    %cst_26 = arith.constant 1.000000e+00 : f32
    %156 = vector.shape_cast %154 : vector<16x1xi1> to vector<16x1xi1>
    %157 = vector.broadcast %156 : vector<16x1xi1> to vector<16x16xi1>
    %158 = vector.shape_cast %155 : vector<1x16xf32> to vector<1x16xf32>
    %159 = vector.broadcast %158 : vector<1x16xf32> to vector<16x16xf32>
    %160 = vector.broadcast %cst_26 : f32 to vector<16x16xf32>
    %161 = arith.select %157, %159, %160 : vector<16x16xi1>, vector<16x16xf32>
    %162 = arith.mulf %153, %161 : vector<16x16xf32>
    %163 = vector.extract_strided_slice %9 {offsets = [0, 16], sizes = [16, 1], strides = [1, 1]} : vector<16x32xi1> to vector<16x1xi1>
    %164 = vector.extract_strided_slice %17 {offsets = [16, 0], sizes = [1, 16], strides = [1, 1]} : vector<32x16xf32> to vector<1x16xf32>
    %cst_27 = arith.constant 1.000000e+00 : f32
    %165 = vector.shape_cast %163 : vector<16x1xi1> to vector<16x1xi1>
    %166 = vector.broadcast %165 : vector<16x1xi1> to vector<16x16xi1>
    %167 = vector.shape_cast %164 : vector<1x16xf32> to vector<1x16xf32>
    %168 = vector.broadcast %167 : vector<1x16xf32> to vector<16x16xf32>
    %169 = vector.broadcast %cst_27 : f32 to vector<16x16xf32>
    %170 = arith.select %166, %168, %169 : vector<16x16xi1>, vector<16x16xf32>
    %171 = arith.mulf %162, %170 : vector<16x16xf32>
    %172 = vector.extract_strided_slice %9 {offsets = [0, 17], sizes = [16, 1], strides = [1, 1]} : vector<16x32xi1> to vector<16x1xi1>
    %173 = vector.extract_strided_slice %17 {offsets = [17, 0], sizes = [1, 16], strides = [1, 1]} : vector<32x16xf32> to vector<1x16xf32>
    %cst_28 = arith.constant 1.000000e+00 : f32
    %174 = vector.shape_cast %172 : vector<16x1xi1> to vector<16x1xi1>
    %175 = vector.broadcast %174 : vector<16x1xi1> to vector<16x16xi1>
    %176 = vector.shape_cast %173 : vector<1x16xf32> to vector<1x16xf32>
    %177 = vector.broadcast %176 : vector<1x16xf32> to vector<16x16xf32>
    %178 = vector.broadcast %cst_28 : f32 to vector<16x16xf32>
    %179 = arith.select %175, %177, %178 : vector<16x16xi1>, vector<16x16xf32>
    %180 = arith.mulf %171, %179 : vector<16x16xf32>
    %181 = vector.extract_strided_slice %9 {offsets = [0, 18], sizes = [16, 1], strides = [1, 1]} : vector<16x32xi1> to vector<16x1xi1>
    %182 = vector.extract_strided_slice %17 {offsets = [18, 0], sizes = [1, 16], strides = [1, 1]} : vector<32x16xf32> to vector<1x16xf32>
    %cst_29 = arith.constant 1.000000e+00 : f32
    %183 = vector.shape_cast %181 : vector<16x1xi1> to vector<16x1xi1>
    %184 = vector.broadcast %183 : vector<16x1xi1> to vector<16x16xi1>
    %185 = vector.shape_cast %182 : vector<1x16xf32> to vector<1x16xf32>
    %186 = vector.broadcast %185 : vector<1x16xf32> to vector<16x16xf32>
    %187 = vector.broadcast %cst_29 : f32 to vector<16x16xf32>
    %188 = arith.select %184, %186, %187 : vector<16x16xi1>, vector<16x16xf32>
    %189 = arith.mulf %180, %188 : vector<16x16xf32>
    %190 = vector.extract_strided_slice %9 {offsets = [0, 19], sizes = [16, 1], strides = [1, 1]} : vector<16x32xi1> to vector<16x1xi1>
    %191 = vector.extract_strided_slice %17 {offsets = [19, 0], sizes = [1, 16], strides = [1, 1]} : vector<32x16xf32> to vector<1x16xf32>
    %cst_30 = arith.constant 1.000000e+00 : f32
    %192 = vector.shape_cast %190 : vector<16x1xi1> to vector<16x1xi1>
    %193 = vector.broadcast %192 : vector<16x1xi1> to vector<16x16xi1>
    %194 = vector.shape_cast %191 : vector<1x16xf32> to vector<1x16xf32>
    %195 = vector.broadcast %194 : vector<1x16xf32> to vector<16x16xf32>
    %196 = vector.broadcast %cst_30 : f32 to vector<16x16xf32>
    %197 = arith.select %193, %195, %196 : vector<16x16xi1>, vector<16x16xf32>
    %198 = arith.mulf %189, %197 : vector<16x16xf32>
    %199 = vector.extract_strided_slice %9 {offsets = [0, 20], sizes = [16, 1], strides = [1, 1]} : vector<16x32xi1> to vector<16x1xi1>
    %200 = vector.extract_strided_slice %17 {offsets = [20, 0], sizes = [1, 16], strides = [1, 1]} : vector<32x16xf32> to vector<1x16xf32>
    %cst_31 = arith.constant 1.000000e+00 : f32
    %201 = vector.shape_cast %199 : vector<16x1xi1> to vector<16x1xi1>
    %202 = vector.broadcast %201 : vector<16x1xi1> to vector<16x16xi1>
    %203 = vector.shape_cast %200 : vector<1x16xf32> to vector<1x16xf32>
    %204 = vector.broadcast %203 : vector<1x16xf32> to vector<16x16xf32>
    %205 = vector.broadcast %cst_31 : f32 to vector<16x16xf32>
    %206 = arith.select %202, %204, %205 : vector<16x16xi1>, vector<16x16xf32>
    %207 = arith.mulf %198, %206 : vector<16x16xf32>
    %208 = vector.extract_strided_slice %9 {offsets = [0, 21], sizes = [16, 1], strides = [1, 1]} : vector<16x32xi1> to vector<16x1xi1>
    %209 = vector.extract_strided_slice %17 {offsets = [21, 0], sizes = [1, 16], strides = [1, 1]} : vector<32x16xf32> to vector<1x16xf32>
    %cst_32 = arith.constant 1.000000e+00 : f32
    %210 = vector.shape_cast %208 : vector<16x1xi1> to vector<16x1xi1>
    %211 = vector.broadcast %210 : vector<16x1xi1> to vector<16x16xi1>
    %212 = vector.shape_cast %209 : vector<1x16xf32> to vector<1x16xf32>
    %213 = vector.broadcast %212 : vector<1x16xf32> to vector<16x16xf32>
    %214 = vector.broadcast %cst_32 : f32 to vector<16x16xf32>
    %215 = arith.select %211, %213, %214 : vector<16x16xi1>, vector<16x16xf32>
    %216 = arith.mulf %207, %215 : vector<16x16xf32>
    %217 = vector.extract_strided_slice %9 {offsets = [0, 22], sizes = [16, 1], strides = [1, 1]} : vector<16x32xi1> to vector<16x1xi1>
    %218 = vector.extract_strided_slice %17 {offsets = [22, 0], sizes = [1, 16], strides = [1, 1]} : vector<32x16xf32> to vector<1x16xf32>
    %cst_33 = arith.constant 1.000000e+00 : f32
    %219 = vector.shape_cast %217 : vector<16x1xi1> to vector<16x1xi1>
    %220 = vector.broadcast %219 : vector<16x1xi1> to vector<16x16xi1>
    %221 = vector.shape_cast %218 : vector<1x16xf32> to vector<1x16xf32>
    %222 = vector.broadcast %221 : vector<1x16xf32> to vector<16x16xf32>
    %223 = vector.broadcast %cst_33 : f32 to vector<16x16xf32>
    %224 = arith.select %220, %222, %223 : vector<16x16xi1>, vector<16x16xf32>
    %225 = arith.mulf %216, %224 : vector<16x16xf32>
    %226 = vector.extract_strided_slice %9 {offsets = [0, 23], sizes = [16, 1], strides = [1, 1]} : vector<16x32xi1> to vector<16x1xi1>
    %227 = vector.extract_strided_slice %17 {offsets = [23, 0], sizes = [1, 16], strides = [1, 1]} : vector<32x16xf32> to vector<1x16xf32>
    %cst_34 = arith.constant 1.000000e+00 : f32
    %228 = vector.shape_cast %226 : vector<16x1xi1> to vector<16x1xi1>
    %229 = vector.broadcast %228 : vector<16x1xi1> to vector<16x16xi1>
    %230 = vector.shape_cast %227 : vector<1x16xf32> to vector<1x16xf32>
    %231 = vector.broadcast %230 : vector<1x16xf32> to vector<16x16xf32>
    %232 = vector.broadcast %cst_34 : f32 to vector<16x16xf32>
    %233 = arith.select %229, %231, %232 : vector<16x16xi1>, vector<16x16xf32>
    %234 = arith.mulf %225, %233 : vector<16x16xf32>
    %235 = vector.extract_strided_slice %9 {offsets = [0, 24], sizes = [16, 1], strides = [1, 1]} : vector<16x32xi1> to vector<16x1xi1>
    %236 = vector.extract_strided_slice %17 {offsets = [24, 0], sizes = [1, 16], strides = [1, 1]} : vector<32x16xf32> to vector<1x16xf32>
    %cst_35 = arith.constant 1.000000e+00 : f32
    %237 = vector.shape_cast %235 : vector<16x1xi1> to vector<16x1xi1>
    %238 = vector.broadcast %237 : vector<16x1xi1> to vector<16x16xi1>
    %239 = vector.shape_cast %236 : vector<1x16xf32> to vector<1x16xf32>
    %240 = vector.broadcast %239 : vector<1x16xf32> to vector<16x16xf32>
    %241 = vector.broadcast %cst_35 : f32 to vector<16x16xf32>
    %242 = arith.select %238, %240, %241 : vector<16x16xi1>, vector<16x16xf32>
    %243 = arith.mulf %234, %242 : vector<16x16xf32>
    %244 = vector.extract_strided_slice %9 {offsets = [0, 25], sizes = [16, 1], strides = [1, 1]} : vector<16x32xi1> to vector<16x1xi1>
    %245 = vector.extract_strided_slice %17 {offsets = [25, 0], sizes = [1, 16], strides = [1, 1]} : vector<32x16xf32> to vector<1x16xf32>
    %cst_36 = arith.constant 1.000000e+00 : f32
    %246 = vector.shape_cast %244 : vector<16x1xi1> to vector<16x1xi1>
    %247 = vector.broadcast %246 : vector<16x1xi1> to vector<16x16xi1>
    %248 = vector.shape_cast %245 : vector<1x16xf32> to vector<1x16xf32>
    %249 = vector.broadcast %248 : vector<1x16xf32> to vector<16x16xf32>
    %250 = vector.broadcast %cst_36 : f32 to vector<16x16xf32>
    %251 = arith.select %247, %249, %250 : vector<16x16xi1>, vector<16x16xf32>
    %252 = arith.mulf %243, %251 : vector<16x16xf32>
    %253 = vector.extract_strided_slice %9 {offsets = [0, 26], sizes = [16, 1], strides = [1, 1]} : vector<16x32xi1> to vector<16x1xi1>
    %254 = vector.extract_strided_slice %17 {offsets = [26, 0], sizes = [1, 16], strides = [1, 1]} : vector<32x16xf32> to vector<1x16xf32>
    %cst_37 = arith.constant 1.000000e+00 : f32
    %255 = vector.shape_cast %253 : vector<16x1xi1> to vector<16x1xi1>
    %256 = vector.broadcast %255 : vector<16x1xi1> to vector<16x16xi1>
    %257 = vector.shape_cast %254 : vector<1x16xf32> to vector<1x16xf32>
    %258 = vector.broadcast %257 : vector<1x16xf32> to vector<16x16xf32>
    %259 = vector.broadcast %cst_37 : f32 to vector<16x16xf32>
    %260 = arith.select %256, %258, %259 : vector<16x16xi1>, vector<16x16xf32>
    %261 = arith.mulf %252, %260 : vector<16x16xf32>
    %262 = vector.extract_strided_slice %9 {offsets = [0, 27], sizes = [16, 1], strides = [1, 1]} : vector<16x32xi1> to vector<16x1xi1>
    %263 = vector.extract_strided_slice %17 {offsets = [27, 0], sizes = [1, 16], strides = [1, 1]} : vector<32x16xf32> to vector<1x16xf32>
    %cst_38 = arith.constant 1.000000e+00 : f32
    %264 = vector.shape_cast %262 : vector<16x1xi1> to vector<16x1xi1>
    %265 = vector.broadcast %264 : vector<16x1xi1> to vector<16x16xi1>
    %266 = vector.shape_cast %263 : vector<1x16xf32> to vector<1x16xf32>
    %267 = vector.broadcast %266 : vector<1x16xf32> to vector<16x16xf32>
    %268 = vector.broadcast %cst_38 : f32 to vector<16x16xf32>
    %269 = arith.select %265, %267, %268 : vector<16x16xi1>, vector<16x16xf32>
    %270 = arith.mulf %261, %269 : vector<16x16xf32>
    %271 = vector.extract_strided_slice %9 {offsets = [0, 28], sizes = [16, 1], strides = [1, 1]} : vector<16x32xi1> to vector<16x1xi1>
    %272 = vector.extract_strided_slice %17 {offsets = [28, 0], sizes = [1, 16], strides = [1, 1]} : vector<32x16xf32> to vector<1x16xf32>
    %cst_39 = arith.constant 1.000000e+00 : f32
    %273 = vector.shape_cast %271 : vector<16x1xi1> to vector<16x1xi1>
    %274 = vector.broadcast %273 : vector<16x1xi1> to vector<16x16xi1>
    %275 = vector.shape_cast %272 : vector<1x16xf32> to vector<1x16xf32>
    %276 = vector.broadcast %275 : vector<1x16xf32> to vector<16x16xf32>
    %277 = vector.broadcast %cst_39 : f32 to vector<16x16xf32>
    %278 = arith.select %274, %276, %277 : vector<16x16xi1>, vector<16x16xf32>
    %279 = arith.mulf %270, %278 : vector<16x16xf32>
    %280 = vector.extract_strided_slice %9 {offsets = [0, 29], sizes = [16, 1], strides = [1, 1]} : vector<16x32xi1> to vector<16x1xi1>
    %281 = vector.extract_strided_slice %17 {offsets = [29, 0], sizes = [1, 16], strides = [1, 1]} : vector<32x16xf32> to vector<1x16xf32>
    %cst_40 = arith.constant 1.000000e+00 : f32
    %282 = vector.shape_cast %280 : vector<16x1xi1> to vector<16x1xi1>
    %283 = vector.broadcast %282 : vector<16x1xi1> to vector<16x16xi1>
    %284 = vector.shape_cast %281 : vector<1x16xf32> to vector<1x16xf32>
    %285 = vector.broadcast %284 : vector<1x16xf32> to vector<16x16xf32>
    %286 = vector.broadcast %cst_40 : f32 to vector<16x16xf32>
    %287 = arith.select %283, %285, %286 : vector<16x16xi1>, vector<16x16xf32>
    %288 = arith.mulf %279, %287 : vector<16x16xf32>
    %289 = vector.extract_strided_slice %9 {offsets = [0, 30], sizes = [16, 1], strides = [1, 1]} : vector<16x32xi1> to vector<16x1xi1>
    %290 = vector.extract_strided_slice %17 {offsets = [30, 0], sizes = [1, 16], strides = [1, 1]} : vector<32x16xf32> to vector<1x16xf32>
    %cst_41 = arith.constant 1.000000e+00 : f32
    %291 = vector.shape_cast %289 : vector<16x1xi1> to vector<16x1xi1>
    %292 = vector.broadcast %291 : vector<16x1xi1> to vector<16x16xi1>
    %293 = vector.shape_cast %290 : vector<1x16xf32> to vector<1x16xf32>
    %294 = vector.broadcast %293 : vector<1x16xf32> to vector<16x16xf32>
    %295 = vector.broadcast %cst_41 : f32 to vector<16x16xf32>
    %296 = arith.select %292, %294, %295 : vector<16x16xi1>, vector<16x16xf32>
    %297 = arith.mulf %288, %296 : vector<16x16xf32>
    %298 = vector.extract_strided_slice %9 {offsets = [0, 31], sizes = [16, 1], strides = [1, 1]} : vector<16x32xi1> to vector<16x1xi1>
    %299 = vector.extract_strided_slice %17 {offsets = [31, 0], sizes = [1, 16], strides = [1, 1]} : vector<32x16xf32> to vector<1x16xf32>
    %cst_42 = arith.constant 1.000000e+00 : f32
    %300 = vector.shape_cast %298 : vector<16x1xi1> to vector<16x1xi1>
    %301 = vector.broadcast %300 : vector<16x1xi1> to vector<16x16xi1>
    %302 = vector.shape_cast %299 : vector<1x16xf32> to vector<1x16xf32>
    %303 = vector.broadcast %302 : vector<1x16xf32> to vector<16x16xf32>
    %304 = vector.broadcast %cst_42 : f32 to vector<16x16xf32>
    %305 = arith.select %301, %303, %304 : vector<16x16xi1>, vector<16x16xf32>
    %306 = arith.mulf %297, %305 : vector<16x16xf32>
    %c0_43 = arith.constant 0 : index
    %c0_44 = arith.constant 0 : index
    %307 = vector.load %arg6[%c0_43, %c0_44] : memref<16x16xf32, #tpu.memory_space<vmem>>, vector<16x16xf32>
    %308 = arith.mulf %307, %306 : vector<16x16xf32>
    %c0_45 = arith.constant 0 : index
    %c0_46 = arith.constant 0 : index
    %309 = vector.load %arg6[%c0_45, %c0_46] : memref<16x16xf32, #tpu.memory_space<vmem>>, vector<16x16xf32>
    tpu.vector_store %arg6[%c0_45, %c0_46], %308 {strides = array<i32>} : memref<16x16xf32, #tpu.memory_space<vmem>>, vector<16x16xf32>,
    return
  }
  func.func @transform_0(%arg0: i32, %arg1: i32) -> (i32, i32) {
    %c0_i32 = arith.constant 0 : i32
    %c0_i32_0 = arith.constant 0 : i32
    return %c0_i32, %arg1 : i32, i32
  }
  func.func @transform_1(%arg0: i32, %arg1: i32) -> (i32, i32) {
    %c0_i32 = arith.constant 0 : i32
    %c0_i32_0 = arith.constant 0 : i32
    return %arg1, %c0_i32 : i32, i32
  }
  func.func @transform_2(%arg0: i32, %arg1: i32) -> (i32, i32) {
    %c0_i32 = arith.constant 0 : i32
    %c0_i32_0 = arith.constant 0 : i32
    return %arg1, %c0_i32 : i32, i32
  }
  func.func @transform_3(%arg0: i32, %arg1: i32) -> (i32, i32) {
    %c0_i32 = arith.constant 0 : i32
    %c0_i32_0 = arith.constant 0 : i32
    return %arg0, %c0_i32 : i32, i32
  }
  func.func @transform_4(%arg0: i32, %arg1: i32) -> (i32, i32) {
    %c0_i32 = arith.constant 0 : i32
    %c0_i32_0 = arith.constant 0 : i32
    return %arg0, %c0_i32 : i32, i32
  }
}

module attributes {stable_mosaic.version = 11 : i64} {
  func.func @_attn_kernel(%arg0: i32, %arg1: memref<16x16xf32, #tpu.memory_space<vmem>>, %arg2: memref<16x32xf32, #tpu.memory_space<vmem>>, %arg3: memref<16x32xf32, #tpu.memory_space<vmem>>, %arg4: memref<16x32xf32, #tpu.memory_space<vmem>>, %arg5: memref<1x32xf32, #tpu.memory_space<vmem>>, %arg6: memref<32x1xf32, #tpu.memory_space<vmem>>, %arg7: memref<32x1xf32, #tpu.memory_space<vmem>>, %arg8: memref<32x1xf32, #tpu.memory_space<vmem>>, %arg9: memref<3x3xf32, #tpu.memory_space<smem>>, %arg10: memref<16x32xf32, #tpu.memory_space<vmem>>) attributes {dimension_semantics = [#tpu.dimension_semantics<parallel>], iteration_bounds = array<i64: 1>, scalar_prefetch = 0 : i64, scratch_operands = 0 : i64, tpu.core_type = #tpu.core_type<tc>, window_params = [{transform_indices = @transform_0, window_bounds = array<i64: 16, 16>}, {transform_indices = @transform_1, window_bounds = array<i64: 16, 32>}, {transform_indices = @transform_2, window_bounds = array<i64: 16, 32>}, {pipeline_mode = #tpu.pipeline_mode<synchronous>, transform_indices = @transform_3, window_bounds = array<i64: 16, 32>}, {pipeline_mode = #tpu.pipeline_mode<synchronous>, transform_indices = @transform_4, window_bounds = array<i64: 1, 32>}, {pipeline_mode = #tpu.pipeline_mode<synchronous>, transform_indices = @transform_5, window_bounds = array<i64: 32, 1>}, {pipeline_mode = #tpu.pipeline_mode<synchronous>, transform_indices = @transform_6, window_bounds = array<i64: 32, 1>}, {pipeline_mode = #tpu.pipeline_mode<synchronous>, transform_indices = @transform_7, window_bounds = array<i64: 32, 1>}, {transform_indices = @transform_8, window_bounds = array<i64: 3, 3>}, {transform_indices = @transform_9, window_bounds = array<i64: 16, 32>}]} {
    %c0 = arith.constant 0 : index
    %c0_0 = arith.constant 0 : index
    %0 = vector.load %arg1[%c0, %c0_0] : memref<16x16xf32, #tpu.memory_space<vmem>>, vector<16x16xf32>
    %c0_1 = arith.constant 0 : index
    %c0_2 = arith.constant 0 : index
    %1 = vector.load %arg4[%c0_1, %c0_2] : memref<16x32xf32, #tpu.memory_space<vmem>>, vector<16x32xf32>
    %cst = arith.constant dense<0.000000e+00> : vector<16x32xf32>
    %2 = tpu.matmul %0, %1, %cst {dimension_numbers = #tpu.dot_dimension_numbers<[1], [0], [0], [1], [0, 0, 1, 1], [], []>} : vector<16x16xf32>, vector<16x32xf32>, vector<16x32xf32> -> vector<16x32xf32>
    %c0_3 = arith.constant 0 : index
    %c0_4 = arith.constant 0 : index
    %3 = vector.load %arg5[%c0_3, %c0_4] : memref<1x32xf32, #tpu.memory_space<vmem>>, vector<1x32xf32>
    %4 = vector.broadcast %3 : vector<1x32xf32> to vector<16x32xf32>
    %5 = arith.addf %2, %4 : vector<16x32xf32>
    %c0_5 = arith.constant 0 : index
    %c0_6 = arith.constant 0 : index
    %6 = vector.load %arg2[%c0_5, %c0_6] : memref<16x32xf32, #tpu.memory_space<vmem>>, vector<16x32xf32>
    %c0_7 = arith.constant 0 : index
    %c0_8 = arith.constant 0 : index
    %7 = vector.load %arg3[%c0_7, %c0_8] : memref<16x32xf32, #tpu.memory_space<vmem>>, vector<16x32xf32>
    %c0_9 = arith.constant 0 : index
    %c0_10 = arith.constant 0 : index
    %8 = vector.load %arg6[%c0_9, %c0_10] : memref<32x1xf32, #tpu.memory_space<vmem>>, vector<32x1xf32>
    %cst_11 = arith.constant dense<0.000000e+00> : vector<16x1xf32>
    %9 = tpu.matmul %5, %8, %cst_11 {dimension_numbers = #tpu.dot_dimension_numbers<[1], [0], [0], [1], [0, 0, 1, 1], [], []>} : vector<16x32xf32>, vector<32x1xf32>, vector<16x1xf32> -> vector<16x1xf32>
    %10 = arith.negf %9 : vector<16x1xf32>
    %11 = math.exp %10 : vector<16x1xf32>
    %cst_12 = arith.constant 1.000000e+00 : f32
    %12 = vector.broadcast %cst_12 : f32 to vector<16x1xf32>
    %13 = arith.addf %12, %11 : vector<16x1xf32>
    %14 = arith.divf %12, %13 : vector<16x1xf32>
    %c0_13 = arith.constant 0 : index
    %c0_14 = arith.constant 0 : index
    %15 = vector.load %arg7[%c0_13, %c0_14] : memref<32x1xf32, #tpu.memory_space<vmem>>, vector<32x1xf32>
    %cst_15 = arith.constant dense<0.000000e+00> : vector<16x1xf32>
    %16 = tpu.matmul %6, %15, %cst_15 {dimension_numbers = #tpu.dot_dimension_numbers<[1], [0], [0], [1], [0, 0, 1, 1], [], []>} : vector<16x32xf32>, vector<32x1xf32>, vector<16x1xf32> -> vector<16x1xf32>
    %17 = arith.negf %16 : vector<16x1xf32>
    %18 = math.exp %17 : vector<16x1xf32>
    %cst_16 = arith.constant 1.000000e+00 : f32
    %19 = vector.broadcast %cst_16 : f32 to vector<16x1xf32>
    %20 = arith.addf %19, %18 : vector<16x1xf32>
    %21 = arith.divf %19, %20 : vector<16x1xf32>
    %c0_17 = arith.constant 0 : index
    %c0_18 = arith.constant 0 : index
    %22 = vector.load %arg8[%c0_17, %c0_18] : memref<32x1xf32, #tpu.memory_space<vmem>>, vector<32x1xf32>
    %cst_19 = arith.constant dense<0.000000e+00> : vector<16x1xf32>
    %23 = tpu.matmul %7, %22, %cst_19 {dimension_numbers = #tpu.dot_dimension_numbers<[1], [0], [0], [1], [0, 0, 1, 1], [], []>} : vector<16x32xf32>, vector<32x1xf32>, vector<16x1xf32> -> vector<16x1xf32>
    %24 = arith.negf %23 : vector<16x1xf32>
    %25 = math.exp %24 : vector<16x1xf32>
    %cst_20 = arith.constant 1.000000e+00 : f32
    %26 = vector.broadcast %cst_20 : f32 to vector<16x1xf32>
    %27 = arith.addf %26, %25 : vector<16x1xf32>
    %28 = arith.divf %26, %27 : vector<16x1xf32>
    %c0_21 = arith.constant 0 : index
    %c0_22 = arith.constant 0 : index
    %29 = memref.load %arg9[%c0_21, %c0_22] : memref<3x3xf32, #tpu.memory_space<smem>>
    %30 = vector.broadcast %29 : f32 to vector<16x1xf32>
    %31 = arith.mulf %14, %30 : vector<16x1xf32>
    %c0_23 = arith.constant 0 : index
    %c1 = arith.constant 1 : index
    %32 = memref.load %arg9[%c0_23, %c1] : memref<3x3xf32, #tpu.memory_space<smem>>
    %33 = vector.broadcast %32 : f32 to vector<16x1xf32>
    %34 = arith.mulf %21, %33 : vector<16x1xf32>
    %35 = arith.addf %31, %34 : vector<16x1xf32>
    %c0_24 = arith.constant 0 : index
    %c2 = arith.constant 2 : index
    %36 = memref.load %arg9[%c0_24, %c2] : memref<3x3xf32, #tpu.memory_space<smem>>
    %37 = vector.broadcast %36 : f32 to vector<16x1xf32>
    %38 = arith.mulf %28, %37 : vector<16x1xf32>
    %39 = arith.addf %35, %38 : vector<16x1xf32>
    %cst_25 = arith.constant 0.333333343 : f32
    %40 = vector.broadcast %cst_25 : f32 to vector<16x1xf32>
    %41 = arith.mulf %39, %40 : vector<16x1xf32>
    %c1_26 = arith.constant 1 : index
    %c0_27 = arith.constant 0 : index
    %42 = memref.load %arg9[%c1_26, %c0_27] : memref<3x3xf32, #tpu.memory_space<smem>>
    %43 = vector.broadcast %42 : f32 to vector<16x1xf32>
    %44 = arith.mulf %14, %43 : vector<16x1xf32>
    %c1_28 = arith.constant 1 : index
    %c1_29 = arith.constant 1 : index
    %45 = memref.load %arg9[%c1_28, %c1_29] : memref<3x3xf32, #tpu.memory_space<smem>>
    %46 = vector.broadcast %45 : f32 to vector<16x1xf32>
    %47 = arith.mulf %21, %46 : vector<16x1xf32>
    %48 = arith.addf %44, %47 : vector<16x1xf32>
    %c1_30 = arith.constant 1 : index
    %c2_31 = arith.constant 2 : index
    %49 = memref.load %arg9[%c1_30, %c2_31] : memref<3x3xf32, #tpu.memory_space<smem>>
    %50 = vector.broadcast %49 : f32 to vector<16x1xf32>
    %51 = arith.mulf %28, %50 : vector<16x1xf32>
    %52 = arith.addf %48, %51 : vector<16x1xf32>
    %cst_32 = arith.constant 0.333333343 : f32
    %53 = vector.broadcast %cst_32 : f32 to vector<16x1xf32>
    %54 = arith.mulf %52, %53 : vector<16x1xf32>
    %c2_33 = arith.constant 2 : index
    %c0_34 = arith.constant 0 : index
    %55 = memref.load %arg9[%c2_33, %c0_34] : memref<3x3xf32, #tpu.memory_space<smem>>
    %56 = vector.broadcast %55 : f32 to vector<16x1xf32>
    %57 = arith.mulf %14, %56 : vector<16x1xf32>
    %c2_35 = arith.constant 2 : index
    %c1_36 = arith.constant 1 : index
    %58 = memref.load %arg9[%c2_35, %c1_36] : memref<3x3xf32, #tpu.memory_space<smem>>
    %59 = vector.broadcast %58 : f32 to vector<16x1xf32>
    %60 = arith.mulf %21, %59 : vector<16x1xf32>
    %61 = arith.addf %57, %60 : vector<16x1xf32>
    %c2_37 = arith.constant 2 : index
    %c2_38 = arith.constant 2 : index
    %62 = memref.load %arg9[%c2_37, %c2_38] : memref<3x3xf32, #tpu.memory_space<smem>>
    %63 = vector.broadcast %62 : f32 to vector<16x1xf32>
    %64 = arith.mulf %28, %63 : vector<16x1xf32>
    %65 = arith.addf %61, %64 : vector<16x1xf32>
    %cst_39 = arith.constant 0.333333343 : f32
    %66 = vector.broadcast %cst_39 : f32 to vector<16x1xf32>
    %67 = arith.mulf %65, %66 : vector<16x1xf32>
    %68 = arith.maximumf %41, %54 : vector<16x1xf32>
    %69 = arith.maximumf %68, %67 : vector<16x1xf32>
    %70 = arith.subf %41, %69 : vector<16x1xf32>
    %71 = math.exp %70 : vector<16x1xf32>
    %72 = arith.subf %54, %69 : vector<16x1xf32>
    %73 = math.exp %72 : vector<16x1xf32>
    %74 = arith.subf %67, %69 : vector<16x1xf32>
    %75 = math.exp %74 : vector<16x1xf32>
    %76 = arith.addf %71, %73 : vector<16x1xf32>
    %77 = arith.addf %76, %75 : vector<16x1xf32>
    %78 = vector.broadcast %71 : vector<16x1xf32> to vector<16x32xf32>
    %79 = arith.mulf %78, %5 : vector<16x32xf32>
    %80 = vector.broadcast %73 : vector<16x1xf32> to vector<16x32xf32>
    %81 = arith.mulf %80, %6 : vector<16x32xf32>
    %82 = arith.addf %79, %81 : vector<16x32xf32>
    %83 = vector.broadcast %75 : vector<16x1xf32> to vector<16x32xf32>
    %84 = arith.mulf %83, %7 : vector<16x32xf32>
    %85 = arith.addf %82, %84 : vector<16x32xf32>
    %86 = vector.broadcast %77 : vector<16x1xf32> to vector<16x32xf32>
    %87 = arith.divf %85, %86 : vector<16x32xf32>
    %c0_40 = arith.constant 0 : index
    %c0_41 = arith.constant 0 : index
    %88 = vector.load %arg10[%c0_40, %c0_41] : memref<16x32xf32, #tpu.memory_space<vmem>>, vector<16x32xf32>
    tpu.vector_store %arg10[%c0_40, %c0_41], %87 {strides = array<i32>} : memref<16x32xf32, #tpu.memory_space<vmem>>, vector<16x32xf32>,
    return
  }
  func.func @transform_0(%arg0: i32) -> (i32, i32) {
    %c0_i32 = arith.constant 0 : i32
    %c0_i32_0 = arith.constant 0 : i32
    return %arg0, %c0_i32 : i32, i32
  }
  func.func @transform_1(%arg0: i32) -> (i32, i32) {
    %c0_i32 = arith.constant 0 : i32
    %c0_i32_0 = arith.constant 0 : i32
    return %arg0, %c0_i32 : i32, i32
  }
  func.func @transform_2(%arg0: i32) -> (i32, i32) {
    %c0_i32 = arith.constant 0 : i32
    %c0_i32_0 = arith.constant 0 : i32
    return %arg0, %c0_i32 : i32, i32
  }
  func.func @transform_3(%arg0: i32) -> (i32, i32) {
    %c0_i32 = arith.constant 0 : i32
    %c0_i32_0 = arith.constant 0 : i32
    %c0_i32_1 = arith.constant 0 : i32
    return %c0_i32, %c0_i32_0 : i32, i32
  }
  func.func @transform_4(%arg0: i32) -> (i32, i32) {
    %c0_i32 = arith.constant 0 : i32
    %c0_i32_0 = arith.constant 0 : i32
    %c0_i32_1 = arith.constant 0 : i32
    return %c0_i32, %c0_i32_0 : i32, i32
  }
  func.func @transform_5(%arg0: i32) -> (i32, i32) {
    %c0_i32 = arith.constant 0 : i32
    %c0_i32_0 = arith.constant 0 : i32
    %c0_i32_1 = arith.constant 0 : i32
    return %c0_i32, %c0_i32_0 : i32, i32
  }
  func.func @transform_6(%arg0: i32) -> (i32, i32) {
    %c0_i32 = arith.constant 0 : i32
    %c0_i32_0 = arith.constant 0 : i32
    %c0_i32_1 = arith.constant 0 : i32
    return %c0_i32, %c0_i32_0 : i32, i32
  }
  func.func @transform_7(%arg0: i32) -> (i32, i32) {
    %c0_i32 = arith.constant 0 : i32
    %c0_i32_0 = arith.constant 0 : i32
    %c0_i32_1 = arith.constant 0 : i32
    return %c0_i32, %c0_i32_0 : i32, i32
  }
  func.func @transform_8(%arg0: i32) -> (i32, i32) {
    %c0_i32 = arith.constant 0 : i32
    %c0_i32_0 = arith.constant 0 : i32
    %c0_i32_1 = arith.constant 0 : i32
    return %c0_i32, %c0_i32_0 : i32, i32
  }
  func.func @transform_9(%arg0: i32) -> (i32, i32) {
    %c0_i32 = arith.constant 0 : i32
    %c0_i32_0 = arith.constant 0 : i32
    return %arg0, %c0_i32 : i32, i32
  }
}

</mosaic_0001>

<llo_original>
// kernel: gcn_conv_forward.3
$region0: #{gcn_conv_forward.3}
  #allocation0 [shape = 'u32[]', space=smem, size = 0x4, offset = 0x4, fixed_abs, tag = 'smem constant byte address 0x4 - core index']
  #allocation1 [shape = 'u32[144,128]{1,0:T(1,128)}', space=vmem, size = 0x12000, scoped, tag = 'internal scratch']
  %s0 = inlined_call_operand.vmem [shape: f32[16,8], index: 0, kind: input, shape index: {}]
  %s1 = inlined_call_operand.vmem [shape: f32[8,128], index: 1, kind: input, shape index: {}]
  %s2 = inlined_call_operand.vmem [shape: f32[1,128], index: 2, kind: input, shape index: {}]
  %s3 = inlined_call_operand.vmem [shape: f32[16,128], index: 3, kind: output, shape index: {}]
  %s4 = sld [smem:[#allocation0]]
  $region22: #{gcn_conv_forward.3} parent=0
    _
  %s6 = ssub.s32 1, %s4
  %s7 = scalar_select 0, %s6, %s4
  // Predicated region
  $region2: #{gcn_conv_forward.3} parent=0 // pred_check
    _
  $region3: #{gcn_conv_forward.3} parent=0 // pred_check_branch
    %9 = sbr.rel (0) target = $region5
  $region4: #{gcn_conv_forward.3} parent=0 // pred_region
    _
  $region5: #{gcn_conv_forward.3} parent=0 // pred_fallthru
    _
  // Predicated region
  $region6: #{gcn_conv_forward.3} parent=0 // pred_check
    _
  $region7: #{gcn_conv_forward.3} parent=0 // pred_check_branch
    %11 = sbr.rel (0) target = $region9
  $region8: #{gcn_conv_forward.3} parent=0 // pred_region
    _
  $region9: #{gcn_conv_forward.3} parent=0 // pred_fallthru
    _
  // Predicated region
  $region10: #{gcn_conv_forward.3} parent=0 // pred_check
    _
  $region11: #{gcn_conv_forward.3} parent=0 // pred_check_branch
    %13 = sbr.rel (0) target = $region13
  $region12: #{gcn_conv_forward.3} parent=0 // pred_region
    _
  $region13: #{gcn_conv_forward.3} parent=0 // pred_fallthru
    _
  %v14 = vld [vmem:[%s0] sm:$0xff]
  %v15 = vld [vmem:[%s0 + $0x8] sm:$0xff]
  %v16 = vld [vmem:[%s1] sm:$0xff]
  %v17 = vld [vmem:[%s2] sm:$0x1]
  %v19 = vlaneseq
  %v20 = vshrl.u32 %v19, 7
  %v21 = vsub.s32 0, %v20
  %v22 = vrot.slane %v17, %v21
  %vm24 = vcmask 64512
  %v26 = vsel %vm24, %v14, 0
  %v29 = vsel %vm24, %v15, 0
  %31 = vmatprep.subr.mxu0 0.0
  %32 = vmatpush1.msra.mxu0 %v16
  %33 = vmatprep.subr.mxu0 0.0
  %34 = vmatpush1.msra.mxu0 0.0
  %35 = vmatprep.subr.mxu0 0.0
  %36 = vmatpush1.msra.mxu0 0.0
  %37 = vmatprep.subr.mxu0 0.0
  %38 = vmatpush1.msra.mxu0 0.0
  %39 = vmatprep.subr.mxu0 0.0
  %40 = vmatpush1.msra.mxu0 0.0
  %41 = vmatprep.subr.mxu0 0.0
  %42 = vmatpush1.msra.mxu0 0.0
  %43 = vmatprep.subr.mxu0 0.0
  %44 = vmatpush1.msra.mxu0 0.0
  %45 = vmatprep.subr.mxu0 0.0
  %46 = vmatpush1.msra.mxu0 0.0
  %47 = vmatprep.subr.mxu0 0.0
  %48 = vmatpush1.msra.mxu0 0.0
  %49 = vmatprep.subr.mxu0 0.0
  %50 = vmatpush1.msra.mxu0 0.0
  %51 = vmatprep.subr.mxu0 0.0
  %52 = vmatpush1.msra.mxu0 0.0
  %53 = vmatprep.subr.mxu0 0.0
  %54 = vmatpush1.msra.mxu0 0.0
  %55 = vmatprep.subr.mxu0 0.0
  %56 = vmatpush1.msra.mxu0 0.0
  %57 = vmatprep.subr.mxu0 0.0
  %58 = vmatpush1.msra.mxu0 0.0
  %59 = vmatprep.subr.mxu0 0.0
  %60 = vmatpush1.msra.mxu0 0.0
  %61 = vmatprep.subr.mxu0 0.0
  %62 = vmatpush1.msra.mxu0 0.0
  %63 = vmatprep.subr.mxu0 0.0
  %64 = vmatpush1.msra.mxu0 0.0
  %65 = vmatprep.subr.mxu0 0.0
  %66 = vmatpush1.msra.mxu0 0.0
  %67 = vmatprep.subr.mxu0 0.0
  %68 = vmatpush1.msra.mxu0 0.0
  %69 = vmatprep.subr.mxu0 0.0
  %70 = vmatpush1.msra.mxu0 0.0
  %71 = vmatprep.subr.mxu0 0.0
  %72 = vmatpush1.msra.mxu0 0.0
  %73 = vmatprep.subr.mxu0 0.0
  %74 = vmatpush1.msra.mxu0 0.0
  %75 = vmatprep.subr.mxu0 0.0
  %76 = vmatpush1.msra.mxu0 0.0
  %77 = vmatprep.subr.mxu0 0.0
  %78 = vmatpush1.msra.mxu0 0.0
  %79 = vmatprep.subr.mxu0 0.0
  %80 = vmatpush1.msra.mxu0 0.0
  %81 = vmatprep.subr.mxu0 0.0
  %82 = vmatpush1.msra.mxu0 0.0
  %83 = vmatprep.subr.mxu0 0.0
  %84 = vmatpush1.msra.mxu0 0.0
  %85 = vmatprep.subr.mxu0 0.0
  %86 = vmatpush1.msra.mxu0 0.0
  %87 = vmatprep.subr.mxu0 0.0
  %88 = vmatpush1.msra.mxu0 0.0
  %89 = vmatprep.subr.mxu0 0.0
  %90 = vmatpush1.msra.mxu0 0.0
  %91 = vmatprep.subr.mxu0 0.0
  %92 = vmatpush1.msra.mxu0 0.0
  %93 = vmatprep.subr.mxu0 0.0
  %94 = vmatpush1.msra.mxu0 0.0
  %95 = vmatprep.mubr.f32.mxu0 0.0
  %96 = vmatmul.mubr.f32.gmra.mrb[0].mxu0 %v26
  %v97 = vpop.f32.mrb[0].mxu0
  %v98 = vadd.f32 %v22, %v97
  %v99 = vpop.f32.mrb[0].mxu0
  %100 = vmatprep.mubr.f32.mxu0 0.0
  %101 = vmatmul.mubr.f32.gmra.mrb[0].mxu0 %v29
  %v102 = vpop.f32.mrb[0].mxu0
  %v103 = vadd.f32 %v22, %v102
  %v104 = vpop.f32.mrb[0].mxu0
  %105 = vdwg.mxu0
  %v106 = vlaneseq
  %v107 = vand.u32 %v106, 127
  %vm108 = vcmp.ge.s32.totalorder %v107, 32
  %vm109 = vcmp.lt.s32.totalorder %v107, 48
  %vm110 = vmand %vm108, %vm109
  %v111 = vtanh.pop %v98
  %v112 = vtanh.pop %v103
  %v113 = vsel %vm110, %v111, %v98
  %v114 = vsel %vm110, %v112, %v103
  %115 = vst [vmem:[%s3] sm:$0xff] %v113
  %116 = vst [vmem:[%s3 + $0x8] sm:$0xff] %v114
  // Predicated region
  $region14: #{gcn_conv_forward.3} parent=0 // pred_check
    _
  $region15: #{gcn_conv_forward.3} parent=0 // pred_check_branch
    %118 = sbr.rel (0) target = $region17
  $region16: #{gcn_conv_forward.3} parent=0 // pred_region
    _
  $region17: #{gcn_conv_forward.3} parent=0 // pred_fallthru
    _
  // Predicated region
  $region18: #{gcn_conv_forward.3} parent=0 // pred_check
    _
  $region19: #{gcn_conv_forward.3} parent=0 // pred_check_branch
    %120 = sbr.rel (0) target = $region21
  $region20: #{gcn_conv_forward.3} parent=0 // pred_region
    _
  $region21: #{gcn_conv_forward.3} parent=0 // pred_fallthru
    _

// kernel: gcn_conv_forward.5
$region0: #{gcn_conv_forward.5}
  #allocation0 [shape = 'u32[]', space=smem, size = 0x4, offset = 0x4, fixed_abs, tag = 'smem constant byte address 0x4 - core index']
  #allocation1 [shape = 'u32[144,128]{1,0:T(1,128)}', space=vmem, size = 0x12000, scoped, tag = 'internal scratch']
  %s0 = inlined_call_operand.vmem [shape: f32[16,16], index: 0, kind: input, shape index: {}]
  %s1 = inlined_call_operand.vmem [shape: f32[16,32], index: 1, kind: input, shape index: {}]
  %s2 = inlined_call_operand.vmem [shape: f32[16,32], index: 2, kind: input, shape index: {}]
  %s3 = inlined_call_operand.vmem [shape: f32[16,32], index: 3, kind: input, shape index: {}]
  %s4 = inlined_call_operand.vmem [shape: f32[1,32], index: 4, kind: input, shape index: {}]
  %s5 = inlined_call_operand.vmem [shape: f32[32,1], index: 5, kind: input, shape index: {}]
  %s6 = inlined_call_operand.vmem [shape: f32[32,1], index: 6, kind: input, shape index: {}]
  %s7 = inlined_call_operand.vmem [shape: f32[32,1], index: 7, kind: input, shape index: {}]
  %s8 = inlined_call_operand.vmem [shape: f32[3,3], index: 8, kind: input, shape index: {}]
  %s9 = inlined_call_operand.hbm [shape: f32[16,32], index: 9, kind: output, shape index: {}]
  %s10 = sld [smem:[#allocation0]]
  $region50: #{gcn_conv_forward.5} parent=0
    _
  %s12 = ssub.s32 1, %s10
  %s13 = scalar_select 0, %s12, %s10
  $region1: #{gcn_conv_forward.5} parent=0
    #allocation2 [shape = 'u8[2048]{0}', space=smem, size = 0x800, scoped, tag = 'input window, operand 8, single buffered']
    #allocation3 [shape = 's32[1]{0}', space=sflag, size = 0x4, scoped, tag = 'scoped memory for gcn_conv_forward.5']
    #allocation4 [shape = 's32[1]{0}', space=sflag, size = 0x4, scoped, tag = 'scoped memory for gcn_conv_forward.5']
    #allocation5 [shape = 'u8[8192]{0}', space=vmem, size = 0x2000, scoped, tag = 'output window, operand 0, single buffered']
    %14 = vsyncpa [#allocation4], 0
    %15 = vsyncpa [#allocation3], 0
    // Predicated region
    $region2: #{gcn_conv_forward.5} parent=1 // pred_check
      _
    $region3: #{gcn_conv_forward.5} parent=1 // pred_check_branch
      %17 = sbr.rel (0) target = $region5
    $region4: #{gcn_conv_forward.5} parent=1 // pred_region
      _
    $region5: #{gcn_conv_forward.5} parent=1 // pred_fallthru
      _
    // Predicated region
    $region6: #{gcn_conv_forward.5} parent=1 // pred_check
      _
    $region7: #{gcn_conv_forward.5} parent=1 // pred_check_branch
      %19 = sbr.rel (0) target = $region9
    $region8: #{gcn_conv_forward.5} parent=1 // pred_region
      _
    $region9: #{gcn_conv_forward.5} parent=1 // pred_fallthru
      _
    // Predicated region
    $region10: #{gcn_conv_forward.5} parent=1 // pred_check
      _
    $region11: #{gcn_conv_forward.5} parent=1 // pred_check_branch
      %21 = sbr.rel (0) target = $region13
    $region12: #{gcn_conv_forward.5} parent=1 // pred_region
      _
    $region13: #{gcn_conv_forward.5} parent=1 // pred_fallthru
      _
    // Predicated region
    $region14: #{gcn_conv_forward.5} parent=1 // pred_check
      _
    $region15: #{gcn_conv_forward.5} parent=1 // pred_check_branch
      %23 = sbr.rel (0) target = $region17
    $region16: #{gcn_conv_forward.5} parent=1 // pred_region
      _
    $region17: #{gcn_conv_forward.5} parent=1 // pred_fallthru
      _
    // Predicated region
    $region18: #{gcn_conv_forward.5} parent=1 // pred_check
      _
    $region19: #{gcn_conv_forward.5} parent=1 // pred_check_branch
      %25 = sbr.rel (0) target = $region21
    $region20: #{gcn_conv_forward.5} parent=1 // pred_region
      _
    $region21: #{gcn_conv_forward.5} parent=1 // pred_fallthru
      _
    // Predicated region
    $region22: #{gcn_conv_forward.5} parent=1 // pred_check
      _
    $region23: #{gcn_conv_forward.5} parent=1 // pred_check_branch
      %27 = sbr.rel (0) target = $region25
    $region24: #{gcn_conv_forward.5} parent=1 // pred_region
      _
    $region25: #{gcn_conv_forward.5} parent=1 // pred_fallthru
      _
    // Predicated region
    $region26: #{gcn_conv_forward.5} parent=1 // pred_check
      _
    $region27: #{gcn_conv_forward.5} parent=1 // pred_check_branch
      %29 = sbr.rel (0) target = $region29
    $region28: #{gcn_conv_forward.5} parent=1 // pred_region
      _
    $region29: #{gcn_conv_forward.5} parent=1 // pred_fallthru
      _
    // Predicated region
    $region30: #{gcn_conv_forward.5} parent=1 // pred_check
      _
    $region31: #{gcn_conv_forward.5} parent=1 // pred_check_branch
      %31 = sbr.rel (0) target = $region33
    $region32: #{gcn_conv_forward.5} parent=1 // pred_region
      _
    $region33: #{gcn_conv_forward.5} parent=1 // pred_fallthru
      _
    // Predicated region
    $region34: #{gcn_conv_forward.5} parent=1 // pred_check
      _
    $region35: #{gcn_conv_forward.5} parent=1 // pred_check_branch
      %33 = sbr.rel (0) target = $region37
    $region36: #{gcn_conv_forward.5} parent=1 // pred_region
      %s35 = ssub.s32 64, 64
      %36 = vsyncadd [#allocation4], %s35
      %s38 = sshll.u32 %s8, 4
      %s39 = int_to_ptr.vmem [resolvable:$true] %s38
      %41 = dma.vmem_to_smem %s39, 64, [#allocation2], [#allocation4]
    $region37: #{gcn_conv_forward.5} parent=1 // pred_fallthru
      _
    // Predicated region
    $region38: #{gcn_conv_forward.5} parent=1 // pred_check
      _
    $region39: #{gcn_conv_forward.5} parent=1 // pred_check_branch
      %43 = sbr.rel (0) target = $region41
    $region40: #{gcn_conv_forward.5} parent=1 // pred_region
      %44 = dma.done [#allocation4], 64
    $region41: #{gcn_conv_forward.5} parent=1 // pred_fallthru
      _
    %45 = sfence
    %v46 = vld [vmem:[%s0] sm:$0xff]
    %v47 = vld [vmem:[%s0 + $0x8] sm:$0xff]
    %v48 = vld [vmem:[%s3] sm:$0xff]
    %v49 = vld [vmem:[%s3 + $0x8] sm:$0xff]
    %v50 = vld [vmem:[%s4] sm:$0x1]
    %v52 = vlaneseq
    %v53 = vshrl.u32 %v52, 7
    %v54 = vsub.s32 0, %v53
    %v55 = vrot.slane %v50, %v54
    %vm57 = vcmask 130048
    %v59 = vsel %vm57, %v46, 0
    %v62 = vsel %vm57, %v47, 0
    %64 = vmatprep.subr.mxu0 0.0
    %65 = vmatpush1.msra.mxu0 %v48
    %66 = vmatprep.subr.mxu0 0.0
    %67 = vmatpush1.msra.mxu0 %v49
    %68 = vmatprep.subr.mxu0 0.0
    %69 = vmatpush1.msra.mxu0 0.0
    %70 = vmatprep.subr.mxu0 0.0
    %71 = vmatpush1.msra.mxu0 0.0
    %72 = vmatprep.subr.mxu0 0.0
    %73 = vmatpush1.msra.mxu0 0.0
    %74 = vmatprep.subr.mxu0 0.0
    %75 = vmatpush1.msra.mxu0 0.0
    %76 = vmatprep.subr.mxu0 0.0
    %77 = vmatpush1.msra.mxu0 0.0
    %78 = vmatprep.subr.mxu0 0.0
    %79 = vmatpush1.msra.mxu0 0.0
    %80 = vmatprep.subr.mxu0 0.0
    %81 = vmatpush1.msra.mxu0 0.0
    %82 = vmatprep.subr.mxu0 0.0
    %83 = vmatpush1.msra.mxu0 0.0
    %84 = vmatprep.subr.mxu0 0.0
    %85 = vmatpush1.msra.mxu0 0.0
    %86 = vmatprep.subr.mxu0 0.0
    %87 = vmatpush1.msra.mxu0 0.0
    %88 = vmatprep.subr.mxu0 0.0
    %89 = vmatpush1.msra.mxu0 0.0
    %90 = vmatprep.subr.mxu0 0.0
    %91 = vmatpush1.msra.mxu0 0.0
    %92 = vmatprep.subr.mxu0 0.0
    %93 = vmatpush1.msra.mxu0 0.0
    %94 = vmatprep.subr.mxu0 0.0
    %95 = vmatpush1.msra.mxu0 0.0
    %96 = vmatprep.subr.mxu0 0.0
    %97 = vmatpush1.msra.mxu0 0.0
    %98 = vmatprep.subr.mxu0 0.0
    %99 = vmatpush1.msra.mxu0 0.0
    %100 = vmatprep.subr.mxu0 0.0
    %101 = vmatpush1.msra.mxu0 0.0
    %102 = vmatprep.subr.mxu0 0.0
    %103 = vmatpush1.msra.mxu0 0.0
    %104 = vmatprep.subr.mxu0 0.0
    %105 = vmatpush1.msra.mxu0 0.0
    %106 = vmatprep.subr.mxu0 0.0
    %107 = vmatpush1.msra.mxu0 0.0
    %108 = vmatprep.subr.mxu0 0.0
    %109 = vmatpush1.msra.mxu0 0.0
    %110 = vmatprep.subr.mxu0 0.0
    %111 = vmatpush1.msra.mxu0 0.0
    %112 = vmatprep.subr.mxu0 0.0
    %113 = vmatpush1.msra.mxu0 0.0
    %114 = vmatprep.subr.mxu0 0.0
    %115 = vmatpush1.msra.mxu0 0.0
    %116 = vmatprep.subr.mxu0 0.0
    %117 = vmatpush1.msra.mxu0 0.0
    %118 = vmatprep.subr.mxu0 0.0
    %119 = vmatpush1.msra.mxu0 0.0
    %120 = vmatprep.subr.mxu0 0.0
    %121 = vmatpush1.msra.mxu0 0.0
    %122 = vmatprep.subr.mxu0 0.0
    %123 = vmatpush1.msra.mxu0 0.0
    %124 = vmatprep.subr.mxu0 0.0
    %125 = vmatpush1.msra.mxu0 0.0
    %126 = vmatprep.subr.mxu0 0.0
    %127 = vmatpush1.msra.mxu0 0.0
    %128 = vmatprep.mubr.f32.mxu0 0.0
    %129 = vmatmul.mubr.f32.gmra.mrb[0].mxu0 %v59
    %v130 = vpop.f32.mrb[0].mxu0
    %v131 = vadd.f32 %v55, %v130
    %v132 = vpop.f32.mrb[0].mxu0
    %133 = vmatprep.mubr.f32.mxu0 0.0
    %134 = vmatmul.mubr.f32.gmra.mrb[0].mxu0 %v62
    %v135 = vpop.f32.mrb[0].mxu0
    %v136 = vadd.f32 %v55, %v135
    %v137 = vpop.f32.mrb[0].mxu0
    %138 = vdwg.mxu0
    %v139 = vld [vmem:[%s1] sm:$0xff]
    %v140 = vld [vmem:[%s1 + $0x8] sm:$0xff]
    %v141 = vld [vmem:[%s2] sm:$0xff]
    %v142 = vld [vmem:[%s2 + $0x8] sm:$0xff]
    %v143 = vld [vmem:[%s5] sm:$0xff]
    %v144 = vld [vmem:[%s5 + $0x8] sm:$0xff]
    %v145 = vld [vmem:[%s5 + $0x10] sm:$0xff]
    %v146 = vld [vmem:[%s5 + $0x18] sm:$0xff]
    %vm147 = vcmask 261120
    %v149 = vsel %vm147, %v131, 0
    %v152 = vsel %vm147, %v136, 0
    %154 = vmatprep.subr.mxu0 0.0
    %155 = vmatpush1.msra.mxu0 %v143
    %156 = vmatprep.subr.mxu0 0.0
    %157 = vmatpush1.msra.mxu0 %v144
    %158 = vmatprep.subr.mxu0 0.0
    %159 = vmatpush1.msra.mxu0 %v145
    %160 = vmatprep.subr.mxu0 0.0
    %161 = vmatpush1.msra.mxu0 %v146
    %162 = vmatprep.subr.mxu0 0.0
    %163 = vmatpush1.msra.mxu0 0.0
    %164 = vmatprep.subr.mxu0 0.0
    %165 = vmatpush1.msra.mxu0 0.0
    %166 = vmatprep.subr.mxu0 0.0
    %167 = vmatpush1.msra.mxu0 0.0
    %168 = vmatprep.subr.mxu0 0.0
    %169 = vmatpush1.msra.mxu0 0.0
    %170 = vmatprep.subr.mxu0 0.0
    %171 = vmatpush1.msra.mxu0 0.0
    %172 = vmatprep.subr.mxu0 0.0
    %173 = vmatpush1.msra.mxu0 0.0
    %174 = vmatprep.subr.mxu0 0.0
    %175 = vmatpush1.msra.mxu0 0.0
    %176 = vmatprep.subr.mxu0 0.0
    %177 = vmatpush1.msra.mxu0 0.0
    %178 = vmatprep.subr.mxu0 0.0
    %179 = vmatpush1.msra.mxu0 0.0
    %180 = vmatprep.subr.mxu0 0.0
    %181 = vmatpush1.msra.mxu0 0.0
    %182 = vmatprep.subr.mxu0 0.0
    %183 = vmatpush1.msra.mxu0 0.0
    %184 = vmatprep.subr.mxu0 0.0
    %185 = vmatpush1.msra.mxu0 0.0
    %186 = vmatprep.subr.mxu0 0.0
    %187 = vmatpush1.msra.mxu0 0.0
    %188 = vmatprep.subr.mxu0 0.0
    %189 = vmatpush1.msra.mxu0 0.0
    %190 = vmatprep.subr.mxu0 0.0
    %191 = vmatpush1.msra.mxu0 0.0
    %192 = vmatprep.subr.mxu0 0.0
    %193 = vmatpush1.msra.mxu0 0.0
    %194 = vmatprep.subr.mxu0 0.0
    %195 = vmatpush1.msra.mxu0 0.0
    %196 = vmatprep.subr.mxu0 0.0
    %197 = vmatpush1.msra.mxu0 0.0
    %198 = vmatprep.subr.mxu0 0.0
    %199 = vmatpush1.msra.mxu0 0.0
    %200 = vmatprep.subr.mxu0 0.0
    %201 = vmatpush1.msra.mxu0 0.0
    %202 = vmatprep.subr.mxu0 0.0
    %203 = vmatpush1.msra.mxu0 0.0
    %204 = vmatprep.subr.mxu0 0.0
    %205 = vmatpush1.msra.mxu0 0.0
    %206 = vmatprep.subr.mxu0 0.0
    %207 = vmatpush1.msra.mxu0 0.0
    %208 = vmatprep.subr.mxu0 0.0
    %209 = vmatpush1.msra.mxu0 0.0
    %210 = vmatprep.subr.mxu0 0.0
    %211 = vmatpush1.msra.mxu0 0.0
    %212 = vmatprep.subr.mxu0 0.0
    %213 = vmatpush1.msra.mxu0 0.0
    %214 = vmatprep.subr.mxu0 0.0
    %215 = vmatpush1.msra.mxu0 0.0
    %216 = vmatprep.subr.mxu0 0.0
    %217 = vmatpush1.msra.mxu0 0.0
    %218 = vmatprep.mubr.f32.mxu0 0.0
    %219 = vmatmul.mubr.f32.gmra.mrb[0].mxu0 %v149
    %v220 = vpop.f32.mrb[0].mxu0
    %v221 = vadd.f32 0.0, %v220
    %v222 = vpop.f32.mrb[0].mxu0
    %223 = vmatprep.mubr.f32.mxu0 0.0
    %224 = vmatmul.mubr.f32.gmra.mrb[0].mxu0 %v152
    %v225 = vpop.f32.mrb[0].mxu0
    %v226 = vadd.f32 0.0, %v225
    %v227 = vpop.f32.mrb[0].mxu0
    %228 = vdwg.mxu0
    %v229 = vxor.u32 %v221, 2147483648
    %v230 = vxor.u32 %v226, 2147483648
    %v231 = vmul.f32 %v229, 1.442695
    %v232 = vpow.pop %v231
    %v233 = vmul.f32 %v230, 1.442695
    %v234 = vpow.pop %v233
    %v235 = vadd.f32 %v232, 1.0
    %v236 = vadd.f32 %v234, 1.0
    %v237 = vrcp.pop %v235
    %v238 = vmul.f32 1.0, %v237
    %v239 = vrcp.pop %v236
    %v240 = vmul.f32 1.0, %v239
    %v241 = vld [vmem:[%s6] sm:$0xff]
    %v242 = vld [vmem:[%s6 + $0x8] sm:$0xff]
    %v243 = vld [vmem:[%s6 + $0x10] sm:$0xff]
    %v244 = vld [vmem:[%s6 + $0x18] sm:$0xff]
    %v246 = vsel %vm147, %v139, 0
    %v249 = vsel %vm147, %v140, 0
    %251 = vmatprep.subr.mxu0 0.0
    %252 = vmatpush1.msra.mxu0 %v241
    %253 = vmatprep.subr.mxu0 0.0
    %254 = vmatpush1.msra.mxu0 %v242
    %255 = vmatprep.subr.mxu0 0.0
    %256 = vmatpush1.msra.mxu0 %v243
    %257 = vmatprep.subr.mxu0 0.0
    %258 = vmatpush1.msra.mxu0 %v244
    %259 = vmatprep.subr.mxu0 0.0
    %260 = vmatpush1.msra.mxu0 0.0
    %261 = vmatprep.subr.mxu0 0.0
    %262 = vmatpush1.msra.mxu0 0.0
    %263 = vmatprep.subr.mxu0 0.0
    %264 = vmatpush1.msra.mxu0 0.0
    %265 = vmatprep.subr.mxu0 0.0
    %266 = vmatpush1.msra.mxu0 0.0
    %267 = vmatprep.subr.mxu0 0.0
    %268 = vmatpush1.msra.mxu0 0.0
    %269 = vmatprep.subr.mxu0 0.0
    %270 = vmatpush1.msra.mxu0 0.0
    %271 = vmatprep.subr.mxu0 0.0
    %272 = vmatpush1.msra.mxu0 0.0
    %273 = vmatprep.subr.mxu0 0.0
    %274 = vmatpush1.msra.mxu0 0.0
    %275 = vmatprep.subr.mxu0 0.0
    %276 = vmatpush1.msra.mxu0 0.0
    %277 = vmatprep.subr.mxu0 0.0
    %278 = vmatpush1.msra.mxu0 0.0
    %279 = vmatprep.subr.mxu0 0.0
    %280 = vmatpush1.msra.mxu0 0.0
    %281 = vmatprep.subr.mxu0 0.0
    %282 = vmatpush1.msra.mxu0 0.0
    %283 = vmatprep.subr.mxu0 0.0
    %284 = vmatpush1.msra.mxu0 0.0
    %285 = vmatprep.subr.mxu0 0.0
    %286 = vmatpush1.msra.mxu0 0.0
    %287 = vmatprep.subr.mxu0 0.0
    %288 = vmatpush1.msra.mxu0 0.0
    %289 = vmatprep.subr.mxu0 0.0
    %290 = vmatpush1.msra.mxu0 0.0
    %291 = vmatprep.subr.mxu0 0.0
    %292 = vmatpush1.msra.mxu0 0.0
    %293 = vmatprep.subr.mxu0 0.0
    %294 = vmatpush1.msra.mxu0 0.0
    %295 = vmatprep.subr.mxu0 0.0
    %296 = vmatpush1.msra.mxu0 0.0
    %297 = vmatprep.subr.mxu0 0.0
    %298 = vmatpush1.msra.mxu0 0.0
    %299 = vmatprep.subr.mxu0 0.0
    %300 = vmatpush1.msra.mxu0 0.0
    %301 = vmatprep.subr.mxu0 0.0
    %302 = vmatpush1.msra.mxu0 0.0
    %303 = vmatprep.subr.mxu0 0.0
    %304 = vmatpush1.msra.mxu0 0.0
    %305 = vmatprep.subr.mxu0 0.0
    %306 = vmatpush1.msra.mxu0 0.0
    %307 = vmatprep.subr.mxu0 0.0
    %308 = vmatpush1.msra.mxu0 0.0
    %309 = vmatprep.subr.mxu0 0.0
    %310 = vmatpush1.msra.mxu0 0.0
    %311 = vmatprep.subr.mxu0 0.0
    %312 = vmatpush1.msra.mxu0 0.0
    %313 = vmatprep.subr.mxu0 0.0
    %314 = vmatpush1.msra.mxu0 0.0
    %315 = vmatprep.mubr.f32.mxu0 0.0
    %316 = vmatmul.mubr.f32.gmra.mrb[0].mxu0 %v246
    %v317 = vpop.f32.mrb[0].mxu0
    %v318 = vadd.f32 0.0, %v317
    %v319 = vpop.f32.mrb[0].mxu0
    %320 = vmatprep.mubr.f32.mxu0 0.0
    %321 = vmatmul.mubr.f32.gmra.mrb[0].mxu0 %v249
    %v322 = vpop.f32.mrb[0].mxu0
    %v323 = vadd.f32 0.0, %v322
    %v324 = vpop.f32.mrb[0].mxu0
    %325 = vdwg.mxu0
    %v326 = vxor.u32 %v318, 2147483648
    %v327 = vxor.u32 %v323, 2147483648
    %v328 = vmul.f32 %v326, 1.442695
    %v329 = vpow.pop %v328
    %v330 = vmul.f32 %v327, 1.442695
    %v331 = vpow.pop %v330
    %v332 = vadd.f32 %v329, 1.0
    %v333 = vadd.f32 %v331, 1.0
    %v334 = vrcp.pop %v332
    %v335 = vmul.f32 1.0, %v334
    %v336 = vrcp.pop %v333
    %v337 = vmul.f32 1.0, %v336
    %v338 = vld [vmem:[%s7] sm:$0xff]
    %v339 = vld [vmem:[%s7 + $0x8] sm:$0xff]
    %v340 = vld [vmem:[%s7 + $0x10] sm:$0xff]
    %v341 = vld [vmem:[%s7 + $0x18] sm:$0xff]
    %v343 = vsel %vm147, %v141, 0
    %v346 = vsel %vm147, %v142, 0
    %348 = vmatprep.subr.mxu0 0.0
    %349 = vmatpush1.msra.mxu0 %v338
    %350 = vmatprep.subr.mxu0 0.0
    %351 = vmatpush1.msra.mxu0 %v339
    %352 = vmatprep.subr.mxu0 0.0
    %353 = vmatpush1.msra.mxu0 %v340
    %354 = vmatprep.subr.mxu0 0.0
    %355 = vmatpush1.msra.mxu0 %v341
    %356 = vmatprep.subr.mxu0 0.0
    %357 = vmatpush1.msra.mxu0 0.0
    %358 = vmatprep.subr.mxu0 0.0
    %359 = vmatpush1.msra.mxu0 0.0
    %360 = vmatprep.subr.mxu0 0.0
    %361 = vmatpush1.msra.mxu0 0.0
    %362 = vmatprep.subr.mxu0 0.0
    %363 = vmatpush1.msra.mxu0 0.0
    %364 = vmatprep.subr.mxu0 0.0
    %365 = vmatpush1.msra.mxu0 0.0
    %366 = vmatprep.subr.mxu0 0.0
    %367 = vmatpush1.msra.mxu0 0.0
    %368 = vmatprep.subr.mxu0 0.0
    %369 = vmatpush1.msra.mxu0 0.0
    %370 = vmatprep.subr.mxu0 0.0
    %371 = vmatpush1.msra.mxu0 0.0
    %372 = vmatprep.subr.mxu0 0.0
    %373 = vmatpush1.msra.mxu0 0.0
    %374 = vmatprep.subr.mxu0 0.0
    %375 = vmatpush1.msra.mxu0 0.0
    %376 = vmatprep.subr.mxu0 0.0
    %377 = vmatpush1.msra.mxu0 0.0
    %378 = vmatprep.subr.mxu0 0.0
    %379 = vmatpush1.msra.mxu0 0.0
    %380 = vmatprep.subr.mxu0 0.0
    %381 = vmatpush1.msra.mxu0 0.0
    %382 = vmatprep.subr.mxu0 0.0
    %383 = vmatpush1.msra.mxu0 0.0
    %384 = vmatprep.subr.mxu0 0.0
    %385 = vmatpush1.msra.mxu0 0.0
    %386 = vmatprep.subr.mxu0 0.0
    %387 = vmatpush1.msra.mxu0 0.0
    %388 = vmatprep.subr.mxu0 0.0
    %389 = vmatpush1.msra.mxu0 0.0
    %390 = vmatprep.subr.mxu0 0.0
    %391 = vmatpush1.msra.mxu0 0.0
    %392 = vmatprep.subr.mxu0 0.0
    %393 = vmatpush1.msra.mxu0 0.0
    %394 = vmatprep.subr.mxu0 0.0
    %395 = vmatpush1.msra.mxu0 0.0
    %396 = vmatprep.subr.mxu0 0.0
    %397 = vmatpush1.msra.mxu0 0.0
    %398 = vmatprep.subr.mxu0 0.0
    %399 = vmatpush1.msra.mxu0 0.0
    %400 = vmatprep.subr.mxu0 0.0
    %401 = vmatpush1.msra.mxu0 0.0
    %402 = vmatprep.subr.mxu0 0.0
    %403 = vmatpush1.msra.mxu0 0.0
    %404 = vmatprep.subr.mxu0 0.0
    %405 = vmatpush1.msra.mxu0 0.0
    %406 = vmatprep.subr.mxu0 0.0
    %407 = vmatpush1.msra.mxu0 0.0
    %408 = vmatprep.subr.mxu0 0.0
    %409 = vmatpush1.msra.mxu0 0.0
    %410 = vmatprep.subr.mxu0 0.0
    %411 = vmatpush1.msra.mxu0 0.0
    %412 = vmatprep.mubr.f32.mxu0 0.0
    %413 = vmatmul.mubr.f32.gmra.mrb[0].mxu0 %v343
    %v414 = vpop.f32.mrb[0].mxu0
    %v415 = vadd.f32 0.0, %v414
    %v416 = vpop.f32.mrb[0].mxu0
    %417 = vmatprep.mubr.f32.mxu0 0.0
    %418 = vmatmul.mubr.f32.gmra.mrb[0].mxu0 %v346
    %v419 = vpop.f32.mrb[0].mxu0
    %v420 = vadd.f32 0.0, %v419
    %v421 = vpop.f32.mrb[0].mxu0
    %422 = vdwg.mxu0
    %v423 = vxor.u32 %v415, 2147483648
    %v424 = vxor.u32 %v420, 2147483648
    %v425 = vmul.f32 %v423, 1.442695
    %v426 = vpow.pop %v425
    %v427 = vmul.f32 %v424, 1.442695
    %v428 = vpow.pop %v427
    %v429 = vadd.f32 %v426, 1.0
    %v430 = vadd.f32 %v428, 1.0
    %v431 = vrcp.pop %v429
    %v432 = vmul.f32 1.0, %v431
    %v433 = vrcp.pop %v430
    %v434 = vmul.f32 1.0, %v433
    %s435 = sld [smem:[#allocation2]]
    %v436 = vstv %s435
    %v437 = vmul.f32 %v238, %v436
    %v438 = vmul.f32 %v240, %v436
    %s439 = sld [smem:[#allocation2 + $0x1]]
    %v440 = vstv %s439
    %v441 = vmul.f32 %v335, %v440
    %v442 = vmul.f32 %v337, %v440
    %v443 = vadd.f32 %v437, %v441
    %v444 = vadd.f32 %v438, %v442
    %s445 = sld [smem:[#allocation2 + $0x2]]
    %v446 = vstv %s445
    %v447 = vmul.f32 %v432, %v446
    %v448 = vmul.f32 %v434, %v446
    %v449 = vadd.f32 %v443, %v447
    %v450 = vadd.f32 %v444, %v448
    %v451 = vmul.f32 %v449, 0.33333334
    %v452 = vmul.f32 %v450, 0.33333334
    %s453 = sld [smem:[#allocation2 + $0x80]]
    %v454 = vstv %s453
    %v455 = vmul.f32 %v238, %v454
    %v456 = vmul.f32 %v240, %v454
    %s457 = sld [smem:[#allocation2 + $0x81]]
    %v458 = vstv %s457
    %v459 = vmul.f32 %v335, %v458
    %v460 = vmul.f32 %v337, %v458
    %v461 = vadd.f32 %v455, %v459
    %v462 = vadd.f32 %v456, %v460
    %s463 = sld [smem:[#allocation2 + $0x82]]
    %v464 = vstv %s463
    %v465 = vmul.f32 %v432, %v464
    %v466 = vmul.f32 %v434, %v464
    %v467 = vadd.f32 %v461, %v465
    %v468 = vadd.f32 %v462, %v466
    %v469 = vmul.f32 %v467, 0.33333334
    %v470 = vmul.f32 %v468, 0.33333334
    %s471 = sld [smem:[#allocation2 + $0x100]]
    %v472 = vstv %s471
    %v473 = vmul.f32 %v238, %v472
    %v474 = vmul.f32 %v240, %v472
    %s475 = sld [smem:[#allocation2 + $0x101]]
    %v476 = vstv %s475
    %v477 = vmul.f32 %v335, %v476
    %v478 = vmul.f32 %v337, %v476
    %v479 = vadd.f32 %v473, %v477
    %v480 = vadd.f32 %v474, %v478
    %s481 = sld [smem:[#allocation2 + $0x102]]
    %v482 = vstv %s481
    %v483 = vmul.f32 %v432, %v482
    %v484 = vmul.f32 %v434, %v482
    %v485 = vadd.f32 %v479, %v483
    %v486 = vadd.f32 %v480, %v484
    %v487 = vmul.f32 %v485, 0.33333334
    %v488 = vmul.f32 %v486, 0.33333334
    %v489 = vmax.f32 %v451, %v469
    %v490 = vmax.f32 %v452, %v470
    %v491 = vmax.f32 %v489, %v487
    %v492 = vmax.f32 %v490, %v488
    %v493 = vsub.f32 %v451, %v491
    %v494 = vsub.f32 %v452, %v492
    %v495 = vmul.f32 %v493, 1.442695
    %v496 = vpow.pop %v495
    %v497 = vmul.f32 %v494, 1.442695
    %v498 = vpow.pop %v497
    %v499 = vsub.f32 %v469, %v491
    %v500 = vsub.f32 %v470, %v492
    %v501 = vmul.f32 %v499, 1.442695
    %v502 = vpow.pop %v501
    %v503 = vmul.f32 %v500, 1.442695
    %v504 = vpow.pop %v503
    %v505 = vsub.f32 %v487, %v491
    %v506 = vsub.f32 %v488, %v492
    %v507 = vmul.f32 %v505, 1.442695
    %v508 = vpow.pop %v507
    %v509 = vmul.f32 %v506, 1.442695
    %v510 = vpow.pop %v509
    %v511 = vadd.f32 %v496, %v502
    %v512 = vadd.f32 %v498, %v504
    %v513 = vadd.f32 %v511, %v508
    %v514 = vadd.f32 %v512, %v510
    %516 = vset.pattern.permute.xlu0 0
    %517 = vperm.xlu0 %516, %v496
    %v518 = vpop.permute.xlu0 %517
    %521 = vset.pattern.permute.xlu0 0
    %522 = vperm.xlu0 %521, %v498
    %v523 = vpop.permute.xlu0 %522
    %v525 = vmul.f32 %v518, %v131
    %v526 = vmul.f32 %v523, %v136
    %528 = vset.pattern.permute.xlu0 0
    %529 = vperm.xlu0 %528, %v502
    %v530 = vpop.permute.xlu0 %529
    %533 = vset.pattern.permute.xlu0 0
    %534 = vperm.xlu0 %533, %v504
    %v535 = vpop.permute.xlu0 %534
    %v537 = vmul.f32 %v530, %v139
    %v538 = vmul.f32 %v535, %v140
    %v539 = vadd.f32 %v525, %v537
    %v540 = vadd.f32 %v526, %v538
    %542 = vset.pattern.permute.xlu0 0
    %543 = vperm.xlu0 %542, %v508
    %v544 = vpop.permute.xlu0 %543
    %547 = vset.pattern.permute.xlu0 0
    %548 = vperm.xlu0 %547, %v510
    %v549 = vpop.permute.xlu0 %548
    %v551 = vmul.f32 %v544, %v141
    %v552 = vmul.f32 %v549, %v142
    %v553 = vadd.f32 %v539, %v551
    %v554 = vadd.f32 %v540, %v552
    %556 = vset.pattern.permute.xlu0 0
    %557 = vperm.xlu0 %556, %v513
    %v558 = vpop.permute.xlu0 %557
    %561 = vset.pattern.permute.xlu0 0
    %562 = vperm.xlu0 %561, %v514
    %v563 = vpop.permute.xlu0 %562
    %v565 = vrcp.pop %v558
    %v566 = vmul.f32 %v553, %v565
    %v567 = vrcp.pop %v563
    %v568 = vmul.f32 %v554, %v567
    %569 = vst.msk [vmem:[#allocation5] sm:$0xff] %vm147, %v566
    %570 = vst.msk [vmem:[#allocation5 + $0x8] sm:$0xff] %vm147, %v568
    // Predicated region
    $region42: #{gcn_conv_forward.5} parent=1 // pred_check
      _
    $region43: #{gcn_conv_forward.5} parent=1 // pred_check_branch
      %572 = sbr.rel (0) target = $region45
    $region44: #{gcn_conv_forward.5} parent=1 // pred_region
      %s574 = ssub.s32 256, 256
      %575 = vsyncadd [#allocation3], %s574
      %s576 = sshll.u32 [#allocation5], 4
      %s577 = int_to_ptr.vmem [resolvable:$true] %s576
      %582 = dma.vmem_to_hbm [thread:$0]  %s577, 256, %s9, [#allocation3], 128, 128, 8
    $region45: #{gcn_conv_forward.5} parent=1 // pred_fallthru
      _
    // Predicated region
    $region46: #{gcn_conv_forward.5} parent=1 // pred_check
      _
    $region47: #{gcn_conv_forward.5} parent=1 // pred_check_branch
      %584 = sbr.rel (0) target = $region49
    $region48: #{gcn_conv_forward.5} parent=1 // pred_region
      %585 = dma.done [#allocation3], 256
    $region49: #{gcn_conv_forward.5} parent=1 // pred_fallthru
      _
    %586 = vsyncpa [#allocation3], 1
    %587 = vsyncpa [#allocation4], 1

// kernel: gcn_conv_forward.4
$region0: #{gcn_conv_forward.4}
  #allocation0 [shape = 'u32[]', space=smem, size = 0x4, offset = 0x4, fixed_abs, tag = 'smem constant byte address 0x4 - core index']
  #allocation1 [shape = 'u32[144,128]{1,0:T(1,128)}', space=vmem, size = 0x12000, scoped, tag = 'internal scratch']
  %s0 = inlined_call_operand.vmem [shape: s32[1,32], index: 0, kind: input, shape index: {}]
  %s1 = inlined_call_operand.vmem [shape: f32[32,32], index: 1, kind: input, shape index: {}]
  %s2 = inlined_call_operand.vmem [shape: f32[32,16], index: 2, kind: input, shape index: {}]
  %s3 = inlined_call_operand.vmem [shape: f32[16,32], index: 3, kind: output, shape index: {0}]
  %s4 = inlined_call_operand.vmem [shape: f32[16,16], index: 4, kind: output, shape index: {1}]
  %5 = xla_tuple %s3, %s4
  %s6 = sld [smem:[#allocation0]]
  $region34: #{gcn_conv_forward.4} parent=0
    _
  %s8 = ssub.s32 1, %s6
  %s9 = scalar_select 0, %s8, %s6
  // Predicated region
  $region2: #{gcn_conv_forward.4} parent=0 // pred_check
    _
  $region3: #{gcn_conv_forward.4} parent=0 // pred_check_branch
    %11 = sbr.rel (0) target = $region5
  $region4: #{gcn_conv_forward.4} parent=0 // pred_region
    _
  $region5: #{gcn_conv_forward.4} parent=0 // pred_fallthru
    _
  // Predicated region
  $region6: #{gcn_conv_forward.4} parent=0 // pred_check
    _
  $region7: #{gcn_conv_forward.4} parent=0 // pred_check_branch
    %13 = sbr.rel (0) target = $region9
  $region8: #{gcn_conv_forward.4} parent=0 // pred_region
    _
  $region9: #{gcn_conv_forward.4} parent=0 // pred_fallthru
    _
  // Predicated region
  $region10: #{gcn_conv_forward.4} parent=0 // pred_check
    _
  $region11: #{gcn_conv_forward.4} parent=0 // pred_check_branch
    %15 = sbr.rel (0) target = $region13
  $region12: #{gcn_conv_forward.4} parent=0 // pred_region
    _
  $region13: #{gcn_conv_forward.4} parent=0 // pred_fallthru
    _
  %p16 = scmp.eq.s32.totalorder 0, 0
  // Predicated region
  $region14: #{gcn_conv_forward.4} parent=0 // pred_check
    %p17 = pneg %p16
  $region15: #{gcn_conv_forward.4} parent=0 // pred_check_branch
    %19 = sbr.rel (%p17) target = $region17
  $region16: #{gcn_conv_forward.4} parent=0 // pred_region
    %vm20 = vcmask 261120
    %21 = vst.msk [vmem:[%s3] sm:$0xff] %vm20, 0.0
    %22 = vst.msk [vmem:[%s3 + $0x8] sm:$0xff] %vm20, 0.0
    %vm23 = vcmask 130048
    %24 = vst.msk [vmem:[%s4] sm:$0xff] %vm23, 1.0
    %25 = vst.msk [vmem:[%s4 + $0x8] sm:$0xff] %vm23, 1.0
  $region17: #{gcn_conv_forward.4} parent=0 // pred_fallthru
    _
  %v26 = vld [vmem:[%s0] sm:$0x1]
  %s27 = smul.u32 0, 16
  %v28 = vlaneseq
  %v29 = vshrl.u32 %v28, 7
  %v30 = vadd.s32 %v29, 8
  %v31 = vstv %s27
  %v32 = vadd.s32 %v31, %v29
  %v33 = vadd.s32 %v31, %v30
  %v34 = vlaneseq
  %v35 = vshrl.u32 %v34, 7
  %v36 = vsub.s32 0, %v35
  %v37 = vrot.slane %v26, %v36
  %vm38 = vcmp.eq.s32.totalorder %v37, %v32
  %vm39 = vcmp.eq.s32.totalorder %v37, %v33
  %v40 = vld [vmem:[%s3] sm:$0xff]
  %v41 = vld [vmem:[%s3 + $0x8] sm:$0xff]
  %v42 = vsel %vm38, 1, 0
  %v43 = vsel %vm39, 1, 0
  %v44 = vcvt.s32.f32 %v42
  %v45 = vcvt.s32.f32 %v43
  %v46 = vld [vmem:[%s1] sm:$0xff]
  %v47 = vld [vmem:[%s1 + $0x8] sm:$0xff]
  %v48 = vld [vmem:[%s1 + $0x10] sm:$0xff]
  %v49 = vld [vmem:[%s1 + $0x18] sm:$0xff]
  %vm50 = vcmask 261120
  %v52 = vsel %vm50, %v44, 0
  %v55 = vsel %vm50, %v45, 0
  %57 = vmatprep.subr.mxu0 0.0
  %58 = vmatpush1.msra.mxu0 %v46
  %59 = vmatprep.subr.mxu0 0.0
  %60 = vmatpush1.msra.mxu0 %v47
  %61 = vmatprep.subr.mxu0 0.0
  %62 = vmatpush1.msra.mxu0 %v48
  %63 = vmatprep.subr.mxu0 0.0
  %64 = vmatpush1.msra.mxu0 %v49
  %65 = vmatprep.subr.mxu0 0.0
  %66 = vmatpush1.msra.mxu0 0.0
  %67 = vmatprep.subr.mxu0 0.0
  %68 = vmatpush1.msra.mxu0 0.0
  %69 = vmatprep.subr.mxu0 0.0
  %70 = vmatpush1.msra.mxu0 0.0
  %71 = vmatprep.subr.mxu0 0.0
  %72 = vmatpush1.msra.mxu0 0.0
  %73 = vmatprep.subr.mxu0 0.0
  %74 = vmatpush1.msra.mxu0 0.0
  %75 = vmatprep.subr.mxu0 0.0
  %76 = vmatpush1.msra.mxu0 0.0
  %77 = vmatprep.subr.mxu0 0.0
  %78 = vmatpush1.msra.mxu0 0.0
  %79 = vmatprep.subr.mxu0 0.0
  %80 = vmatpush1.msra.mxu0 0.0
  %81 = vmatprep.subr.mxu0 0.0
  %82 = vmatpush1.msra.mxu0 0.0
  %83 = vmatprep.subr.mxu0 0.0
  %84 = vmatpush1.msra.mxu0 0.0
  %85 = vmatprep.subr.mxu0 0.0
  %86 = vmatpush1.msra.mxu0 0.0
  %87 = vmatprep.subr.mxu0 0.0
  %88 = vmatpush1.msra.mxu0 0.0
  %89 = vmatprep.subr.mxu0 0.0
  %90 = vmatpush1.msra.mxu0 0.0
  %91 = vmatprep.subr.mxu0 0.0
  %92 = vmatpush1.msra.mxu0 0.0
  %93 = vmatprep.subr.mxu0 0.0
  %94 = vmatpush1.msra.mxu0 0.0
  %95 = vmatprep.subr.mxu0 0.0
  %96 = vmatpush1.msra.mxu0 0.0
  %97 = vmatprep.subr.mxu0 0.0
  %98 = vmatpush1.msra.mxu0 0.0
  %99 = vmatprep.subr.mxu0 0.0
  %100 = vmatpush1.msra.mxu0 0.0
  %101 = vmatprep.subr.mxu0 0.0
  %102 = vmatpush1.msra.mxu0 0.0
  %103 = vmatprep.subr.mxu0 0.0
  %104 = vmatpush1.msra.mxu0 0.0
  %105 = vmatprep.subr.mxu0 0.0
  %106 = vmatpush1.msra.mxu0 0.0
  %107 = vmatprep.subr.mxu0 0.0
  %108 = vmatpush1.msra.mxu0 0.0
  %109 = vmatprep.subr.mxu0 0.0
  %110 = vmatpush1.msra.mxu0 0.0
  %111 = vmatprep.subr.mxu0 0.0
  %112 = vmatpush1.msra.mxu0 0.0
  %113 = vmatprep.subr.mxu0 0.0
  %114 = vmatpush1.msra.mxu0 0.0
  %115 = vmatprep.subr.mxu0 0.0
  %116 = vmatpush1.msra.mxu0 0.0
  %117 = vmatprep.subr.mxu0 0.0
  %118 = vmatpush1.msra.mxu0 0.0
  %119 = vmatprep.subr.mxu0 0.0
  %120 = vmatpush1.msra.mxu0 0.0
  %121 = vmatprep.mubr.f32.mxu0 0.0
  %122 = vmatmul.mubr.f32.gmra.mrb[0].mxu0 %v52
  %v123 = vpop.f32.mrb[0].mxu0
  %v124 = vadd.f32 0.0, %v123
  %v125 = vpop.f32.mrb[0].mxu0
  %126 = vmatprep.mubr.f32.mxu0 0.0
  %127 = vmatmul.mubr.f32.gmra.mrb[0].mxu0 %v55
  %v128 = vpop.f32.mrb[0].mxu0
  %v129 = vadd.f32 0.0, %v128
  %v130 = vpop.f32.mrb[0].mxu0
  %131 = vdwg.mxu0
  %v132 = vadd.f32 %v40, %v124
  %v133 = vadd.f32 %v41, %v129
  %134 = vst.msk [vmem:[%s3] sm:$0xff] %vm50, %v132
  %135 = vst.msk [vmem:[%s3 + $0x8] sm:$0xff] %vm50, %v133
  %v136 = vld [vmem:[%s2] sm:$0xff]
  %v137 = vld [vmem:[%s2 + $0x8] sm:$0xff]
  %v138 = vld [vmem:[%s2 + $0x10] sm:$0xff]
  %v139 = vld [vmem:[%s2 + $0x18] sm:$0xff]
  %140 = vset.pattern.permute.xlu0 0
  %141 = vperm.xlu0 %140, %v42
  %v142 = vpop.permute.xlu0 %141
  %143 = vset.pattern.permute.xlu0 0
  %144 = vperm.xlu0 %143, %v43
  %v145 = vpop.permute.xlu0 %144
  %vm146 = vcmp.eq.s32.totalorder %v142, 1
  %vm147 = vcmp.eq.s32.totalorder %v145, 1
  %v148 = vlaneseq
  %v149 = vshrl.u32 %v148, 7
  %v150 = vsub.s32 0, %v149
  %v151 = vrot.slane %v136, %v150
  %v152 = vsel %vm146, %v151, 1.0
  %v153 = vsel %vm147, %v151, 1.0
  %154 = vset.pattern.permute.xlu0 1
  %155 = vperm.xlu0 %154, %v42
  %v156 = vpop.permute.xlu0 %155
  %157 = vset.pattern.permute.xlu0 1
  %158 = vperm.xlu0 %157, %v43
  %v159 = vpop.permute.xlu0 %158
  %vm160 = vcmp.eq.s32.totalorder %v156, 1
  %vm161 = vcmp.eq.s32.totalorder %v159, 1
  %v162 = vlaneseq
  %v163 = vshrl.u32 %v162, 7
  %v164 = vsub.s32 1, %v163
  %v165 = vrot.slane %v136, %v164
  %v166 = vsel %vm160, %v165, 1.0
  %v167 = vsel %vm161, %v165, 1.0
  %v168 = vmul.f32 %v152, %v166
  %v169 = vmul.f32 %v153, %v167
  %170 = vset.pattern.permute.xlu0 2
  %171 = vperm.xlu0 %170, %v42
  %v172 = vpop.permute.xlu0 %171
  %173 = vset.pattern.permute.xlu0 2
  %174 = vperm.xlu0 %173, %v43
  %v175 = vpop.permute.xlu0 %174
  %vm176 = vcmp.eq.s32.totalorder %v172, 1
  %vm177 = vcmp.eq.s32.totalorder %v175, 1
  %v178 = vlaneseq
  %v179 = vshrl.u32 %v178, 7
  %v180 = vsub.s32 2, %v179
  %v181 = vrot.slane %v136, %v180
  %v182 = vsel %vm176, %v181, 1.0
  %v183 = vsel %vm177, %v181, 1.0
  %v184 = vmul.f32 %v168, %v182
  %v185 = vmul.f32 %v169, %v183
  %186 = vset.pattern.permute.xlu0 3
  %187 = vperm.xlu0 %186, %v42
  %v188 = vpop.permute.xlu0 %187
  %189 = vset.pattern.permute.xlu0 3
  %190 = vperm.xlu0 %189, %v43
  %v191 = vpop.permute.xlu0 %190
  %vm192 = vcmp.eq.s32.totalorder %v188, 1
  %vm193 = vcmp.eq.s32.totalorder %v191, 1
  %v194 = vlaneseq
  %v195 = vshrl.u32 %v194, 7
  %v196 = vsub.s32 3, %v195
  %v197 = vrot.slane %v136, %v196
  %v198 = vsel %vm192, %v197, 1.0
  %v199 = vsel %vm193, %v197, 1.0
  %v200 = vmul.f32 %v184, %v198
  %v201 = vmul.f32 %v185, %v199
  %202 = vset.pattern.permute.xlu0 4
  %203 = vperm.xlu0 %202, %v42
  %v204 = vpop.permute.xlu0 %203
  %205 = vset.pattern.permute.xlu0 4
  %206 = vperm.xlu0 %205, %v43
  %v207 = vpop.permute.xlu0 %206
  %vm208 = vcmp.eq.s32.totalorder %v204, 1
  %vm209 = vcmp.eq.s32.totalorder %v207, 1
  %v210 = vlaneseq
  %v211 = vshrl.u32 %v210, 7
  %v212 = vsub.s32 4, %v211
  %v213 = vrot.slane %v136, %v212
  %v214 = vsel %vm208, %v213, 1.0
  %v215 = vsel %vm209, %v213, 1.0
  %v216 = vmul.f32 %v200, %v214
  %v217 = vmul.f32 %v201, %v215
  %218 = vset.pattern.permute.xlu0 5
  %219 = vperm.xlu0 %218, %v42
  %v220 = vpop.permute.xlu0 %219
  %221 = vset.pattern.permute.xlu0 5
  %222 = vperm.xlu0 %221, %v43
  %v223 = vpop.permute.xlu0 %222
  %vm224 = vcmp.eq.s32.totalorder %v220, 1
  %vm225 = vcmp.eq.s32.totalorder %v223, 1
  %v226 = vlaneseq
  %v227 = vshrl.u32 %v226, 7
  %v228 = vsub.s32 5, %v227
  %v229 = vrot.slane %v136, %v228
  %v230 = vsel %vm224, %v229, 1.0
  %v231 = vsel %vm225, %v229, 1.0
  %v232 = vmul.f32 %v216, %v230
  %v233 = vmul.f32 %v217, %v231
  %234 = vset.pattern.permute.xlu0 6
  %235 = vperm.xlu0 %234, %v42
  %v236 = vpop.permute.xlu0 %235
  %237 = vset.pattern.permute.xlu0 6
  %238 = vperm.xlu0 %237, %v43
  %v239 = vpop.permute.xlu0 %238
  %vm240 = vcmp.eq.s32.totalorder %v236, 1
  %vm241 = vcmp.eq.s32.totalorder %v239, 1
  %v242 = vlaneseq
  %v243 = vshrl.u32 %v242, 7
  %v244 = vsub.s32 6, %v243
  %v245 = vrot.slane %v136, %v244
  %v246 = vsel %vm240, %v245, 1.0
  %v247 = vsel %vm241, %v245, 1.0
  %v248 = vmul.f32 %v232, %v246
  %v249 = vmul.f32 %v233, %v247
  %250 = vset.pattern.permute.xlu0 7
  %251 = vperm.xlu0 %250, %v42
  %v252 = vpop.permute.xlu0 %251
  %253 = vset.pattern.permute.xlu0 7
  %254 = vperm.xlu0 %253, %v43
  %v255 = vpop.permute.xlu0 %254
  %vm256 = vcmp.eq.s32.totalorder %v252, 1
  %vm257 = vcmp.eq.s32.totalorder %v255, 1
  %v258 = vlaneseq
  %v259 = vshrl.u32 %v258, 7
  %v260 = vsub.s32 7, %v259
  %v261 = vrot.slane %v136, %v260
  %v262 = vsel %vm256, %v261, 1.0
  %v263 = vsel %vm257, %v261, 1.0
  %v264 = vmul.f32 %v248, %v262
  %v265 = vmul.f32 %v249, %v263
  %266 = vset.pattern.permute.xlu0 8
  %267 = vperm.xlu0 %266, %v42
  %v268 = vpop.permute.xlu0 %267
  %269 = vset.pattern.permute.xlu0 8
  %270 = vperm.xlu0 %269, %v43
  %v271 = vpop.permute.xlu0 %270
  %vm272 = vcmp.eq.s32.totalorder %v268, 1
  %vm273 = vcmp.eq.s32.totalorder %v271, 1
  %v274 = vlaneseq
  %v275 = vshrl.u32 %v274, 7
  %v276 = vsub.s32 0, %v275
  %v277 = vrot.slane %v137, %v276
  %v278 = vsel %vm272, %v277, 1.0
  %v279 = vsel %vm273, %v277, 1.0
  %v280 = vmul.f32 %v264, %v278
  %v281 = vmul.f32 %v265, %v279
  %282 = vset.pattern.permute.xlu0 9
  %283 = vperm.xlu0 %282, %v42
  %v284 = vpop.permute.xlu0 %283
  %285 = vset.pattern.permute.xlu0 9
  %286 = vperm.xlu0 %285, %v43
  %v287 = vpop.permute.xlu0 %286
  %vm288 = vcmp.eq.s32.totalorder %v284, 1
  %vm289 = vcmp.eq.s32.totalorder %v287, 1
  %v290 = vlaneseq
  %v291 = vshrl.u32 %v290, 7
  %v292 = vsub.s32 1, %v291
  %v293 = vrot.slane %v137, %v292
  %v294 = vsel %vm288, %v293, 1.0
  %v295 = vsel %vm289, %v293, 1.0
  %v296 = vmul.f32 %v280, %v294
  %v297 = vmul.f32 %v281, %v295
  %298 = vset.pattern.permute.xlu0 10
  %299 = vperm.xlu0 %298, %v42
  %v300 = vpop.permute.xlu0 %299
  %301 = vset.pattern.permute.xlu0 10
  %302 = vperm.xlu0 %301, %v43
  %v303 = vpop.permute.xlu0 %302
  %vm304 = vcmp.eq.s32.totalorder %v300, 1
  %vm305 = vcmp.eq.s32.totalorder %v303, 1
  %v306 = vlaneseq
  %v307 = vshrl.u32 %v306, 7
  %v308 = vsub.s32 2, %v307
  %v309 = vrot.slane %v137, %v308
  %v310 = vsel %vm304, %v309, 1.0
  %v311 = vsel %vm305, %v309, 1.0
  %v312 = vmul.f32 %v296, %v310
  %v313 = vmul.f32 %v297, %v311
  %314 = vset.pattern.permute.xlu0 11
  %315 = vperm.xlu0 %314, %v42
  %v316 = vpop.permute.xlu0 %315
  %317 = vset.pattern.permute.xlu0 11
  %318 = vperm.xlu0 %317, %v43
  %v319 = vpop.permute.xlu0 %318
  %vm320 = vcmp.eq.s32.totalorder %v316, 1
  %vm321 = vcmp.eq.s32.totalorder %v319, 1
  %v322 = vlaneseq
  %v323 = vshrl.u32 %v322, 7
  %v324 = vsub.s32 3, %v323
  %v325 = vrot.slane %v137, %v324
  %v326 = vsel %vm320, %v325, 1.0
  %v327 = vsel %vm321, %v325, 1.0
  %v328 = vmul.f32 %v312, %v326
  %v329 = vmul.f32 %v313, %v327
  %330 = vset.pattern.permute.xlu0 12
  %331 = vperm.xlu0 %330, %v42
  %v332 = vpop.permute.xlu0 %331
  %333 = vset.pattern.permute.xlu0 12
  %334 = vperm.xlu0 %333, %v43
  %v335 = vpop.permute.xlu0 %334
  %vm336 = vcmp.eq.s32.totalorder %v332, 1
  %vm337 = vcmp.eq.s32.totalorder %v335, 1
  %v338 = vlaneseq
  %v339 = vshrl.u32 %v338, 7
  %v340 = vsub.s32 4, %v339
  %v341 = vrot.slane %v137, %v340
  %v342 = vsel %vm336, %v341, 1.0
  %v343 = vsel %vm337, %v341, 1.0
  %v344 = vmul.f32 %v328, %v342
  %v345 = vmul.f32 %v329, %v343
  %346 = vset.pattern.permute.xlu0 13
  %347 = vperm.xlu0 %346, %v42
  %v348 = vpop.permute.xlu0 %347
  %349 = vset.pattern.permute.xlu0 13
  %350 = vperm.xlu0 %349, %v43
  %v351 = vpop.permute.xlu0 %350
  %vm352 = vcmp.eq.s32.totalorder %v348, 1
  %vm353 = vcmp.eq.s32.totalorder %v351, 1
  %v354 = vlaneseq
  %v355 = vshrl.u32 %v354, 7
  %v356 = vsub.s32 5, %v355
  %v357 = vrot.slane %v137, %v356
  %v358 = vsel %vm352, %v357, 1.0
  %v359 = vsel %vm353, %v357, 1.0
  %v360 = vmul.f32 %v344, %v358
  %v361 = vmul.f32 %v345, %v359
  %362 = vset.pattern.permute.xlu0 14
  %363 = vperm.xlu0 %362, %v42
  %v364 = vpop.permute.xlu0 %363
  %365 = vset.pattern.permute.xlu0 14
  %366 = vperm.xlu0 %365, %v43
  %v367 = vpop.permute.xlu0 %366
  %vm368 = vcmp.eq.s32.totalorder %v364, 1
  %vm369 = vcmp.eq.s32.totalorder %v367, 1
  %v370 = vlaneseq
  %v371 = vshrl.u32 %v370, 7
  %v372 = vsub.s32 6, %v371
  %v373 = vrot.slane %v137, %v372
  %v374 = vsel %vm368, %v373, 1.0
  %v375 = vsel %vm369, %v373, 1.0
  %v376 = vmul.f32 %v360, %v374
  %v377 = vmul.f32 %v361, %v375
  %378 = vset.pattern.permute.xlu0 15
  %379 = vperm.xlu0 %378, %v42
  %v380 = vpop.permute.xlu0 %379
  %381 = vset.pattern.permute.xlu0 15
  %382 = vperm.xlu0 %381, %v43
  %v383 = vpop.permute.xlu0 %382
  %vm384 = vcmp.eq.s32.totalorder %v380, 1
  %vm385 = vcmp.eq.s32.totalorder %v383, 1
  %v386 = vlaneseq
  %v387 = vshrl.u32 %v386, 7
  %v388 = vsub.s32 7, %v387
  %v389 = vrot.slane %v137, %v388
  %v390 = vsel %vm384, %v389, 1.0
  %v391 = vsel %vm385, %v389, 1.0
  %v392 = vmul.f32 %v376, %v390
  %v393 = vmul.f32 %v377, %v391
  %394 = vset.pattern.permute.xlu0 16
  %395 = vperm.xlu0 %394, %v42
  %v396 = vpop.permute.xlu0 %395
  %397 = vset.pattern.permute.xlu0 16
  %398 = vperm.xlu0 %397, %v43
  %v399 = vpop.permute.xlu0 %398
  %vm400 = vcmp.eq.s32.totalorder %v396, 1
  %vm401 = vcmp.eq.s32.totalorder %v399, 1
  %v402 = vlaneseq
  %v403 = vshrl.u32 %v402, 7
  %v404 = vsub.s32 0, %v403
  %v405 = vrot.slane %v138, %v404
  %v406 = vsel %vm400, %v405, 1.0
  %v407 = vsel %vm401, %v405, 1.0
  %v408 = vmul.f32 %v392, %v406
  %v409 = vmul.f32 %v393, %v407
  %410 = vset.pattern.permute.xlu0 17
  %411 = vperm.xlu0 %410, %v42
  %v412 = vpop.permute.xlu0 %411
  %413 = vset.pattern.permute.xlu0 17
  %414 = vperm.xlu0 %413, %v43
  %v415 = vpop.permute.xlu0 %414
  %vm416 = vcmp.eq.s32.totalorder %v412, 1
  %vm417 = vcmp.eq.s32.totalorder %v415, 1
  %v418 = vlaneseq
  %v419 = vshrl.u32 %v418, 7
  %v420 = vsub.s32 1, %v419
  %v421 = vrot.slane %v138, %v420
  %v422 = vsel %vm416, %v421, 1.0
  %v423 = vsel %vm417, %v421, 1.0
  %v424 = vmul.f32 %v408, %v422
  %v425 = vmul.f32 %v409, %v423
  %426 = vset.pattern.permute.xlu0 18
  %427 = vperm.xlu0 %426, %v42
  %v428 = vpop.permute.xlu0 %427
  %429 = vset.pattern.permute.xlu0 18
  %430 = vperm.xlu0 %429, %v43
  %v431 = vpop.permute.xlu0 %430
  %vm432 = vcmp.eq.s32.totalorder %v428, 1
  %vm433 = vcmp.eq.s32.totalorder %v431, 1
  %v434 = vlaneseq
  %v435 = vshrl.u32 %v434, 7
  %v436 = vsub.s32 2, %v435
  %v437 = vrot.slane %v138, %v436
  %v438 = vsel %vm432, %v437, 1.0
  %v439 = vsel %vm433, %v437, 1.0
  %v440 = vmul.f32 %v424, %v438
  %v441 = vmul.f32 %v425, %v439
  %442 = vset.pattern.permute.xlu0 19
  %443 = vperm.xlu0 %442, %v42
  %v444 = vpop.permute.xlu0 %443
  %445 = vset.pattern.permute.xlu0 19
  %446 = vperm.xlu0 %445, %v43
  %v447 = vpop.permute.xlu0 %446
  %vm448 = vcmp.eq.s32.totalorder %v444, 1
  %vm449 = vcmp.eq.s32.totalorder %v447, 1
  %v450 = vlaneseq
  %v451 = vshrl.u32 %v450, 7
  %v452 = vsub.s32 3, %v451
  %v453 = vrot.slane %v138, %v452
  %v454 = vsel %vm448, %v453, 1.0
  %v455 = vsel %vm449, %v453, 1.0
  %v456 = vmul.f32 %v440, %v454
  %v457 = vmul.f32 %v441, %v455
  %458 = vset.pattern.permute.xlu0 20
  %459 = vperm.xlu0 %458, %v42
  %v460 = vpop.permute.xlu0 %459
  %461 = vset.pattern.permute.xlu0 20
  %462 = vperm.xlu0 %461, %v43
  %v463 = vpop.permute.xlu0 %462
  %vm464 = vcmp.eq.s32.totalorder %v460, 1
  %vm465 = vcmp.eq.s32.totalorder %v463, 1
  %v466 = vlaneseq
  %v467 = vshrl.u32 %v466, 7
  %v468 = vsub.s32 4, %v467
  %v469 = vrot.slane %v138, %v468
  %v470 = vsel %vm464, %v469, 1.0
  %v471 = vsel %vm465, %v469, 1.0
  %v472 = vmul.f32 %v456, %v470
  %v473 = vmul.f32 %v457, %v471
  %474 = vset.pattern.permute.xlu0 21
  %475 = vperm.xlu0 %474, %v42
  %v476 = vpop.permute.xlu0 %475
  %477 = vset.pattern.permute.xlu0 21
  %478 = vperm.xlu0 %477, %v43
  %v479 = vpop.permute.xlu0 %478
  %vm480 = vcmp.eq.s32.totalorder %v476, 1
  %vm481 = vcmp.eq.s32.totalorder %v479, 1
  %v482 = vlaneseq
  %v483 = vshrl.u32 %v482, 7
  %v484 = vsub.s32 5, %v483
  %v485 = vrot.slane %v138, %v484
  %v486 = vsel %vm480, %v485, 1.0
  %v487 = vsel %vm481, %v485, 1.0
  %v488 = vmul.f32 %v472, %v486
  %v489 = vmul.f32 %v473, %v487
  %490 = vset.pattern.permute.xlu0 22
  %491 = vperm.xlu0 %490, %v42
  %v492 = vpop.permute.xlu0 %491
  %493 = vset.pattern.permute.xlu0 22
  %494 = vperm.xlu0 %493, %v43
  %v495 = vpop.permute.xlu0 %494
  %vm496 = vcmp.eq.s32.totalorder %v492, 1
  %vm497 = vcmp.eq.s32.totalorder %v495, 1
  %v498 = vlaneseq
  %v499 = vshrl.u32 %v498, 7
  %v500 = vsub.s32 6, %v499
  %v501 = vrot.slane %v138, %v500
  %v502 = vsel %vm496, %v501, 1.0
  %v503 = vsel %vm497, %v501, 1.0
  %v504 = vmul.f32 %v488, %v502
  %v505 = vmul.f32 %v489, %v503
  %506 = vset.pattern.permute.xlu0 23
  %507 = vperm.xlu0 %506, %v42
  %v508 = vpop.permute.xlu0 %507
  %509 = vset.pattern.permute.xlu0 23
  %510 = vperm.xlu0 %509, %v43
  %v511 = vpop.permute.xlu0 %510
  %vm512 = vcmp.eq.s32.totalorder %v508, 1
  %vm513 = vcmp.eq.s32.totalorder %v511, 1
  %v514 = vlaneseq
  %v515 = vshrl.u32 %v514, 7
  %v516 = vsub.s32 7, %v515
  %v517 = vrot.slane %v138, %v516
  %v518 = vsel %vm512, %v517, 1.0
  %v519 = vsel %vm513, %v517, 1.0
  %v520 = vmul.f32 %v504, %v518
  %v521 = vmul.f32 %v505, %v519
  %522 = vset.pattern.permute.xlu0 24
  %523 = vperm.xlu0 %522, %v42
  %v524 = vpop.permute.xlu0 %523
  %525 = vset.pattern.permute.xlu0 24
  %526 = vperm.xlu0 %525, %v43
  %v527 = vpop.permute.xlu0 %526
  %vm528 = vcmp.eq.s32.totalorder %v524, 1
  %vm529 = vcmp.eq.s32.totalorder %v527, 1
  %v530 = vlaneseq
  %v531 = vshrl.u32 %v530, 7
  %v532 = vsub.s32 0, %v531
  %v533 = vrot.slane %v139, %v532
  %v534 = vsel %vm528, %v533, 1.0
  %v535 = vsel %vm529, %v533, 1.0
  %v536 = vmul.f32 %v520, %v534
  %v537 = vmul.f32 %v521, %v535
  %538 = vset.pattern.permute.xlu0 25
  %539 = vperm.xlu0 %538, %v42
  %v540 = vpop.permute.xlu0 %539
  %541 = vset.pattern.permute.xlu0 25
  %542 = vperm.xlu0 %541, %v43
  %v543 = vpop.permute.xlu0 %542
  %vm544 = vcmp.eq.s32.totalorder %v540, 1
  %vm545 = vcmp.eq.s32.totalorder %v543, 1
  %v546 = vlaneseq
  %v547 = vshrl.u32 %v546, 7
  %v548 = vsub.s32 1, %v547
  %v549 = vrot.slane %v139, %v548
  %v550 = vsel %vm544, %v549, 1.0
  %v551 = vsel %vm545, %v549, 1.0
  %v552 = vmul.f32 %v536, %v550
  %v553 = vmul.f32 %v537, %v551
  %554 = vset.pattern.permute.xlu0 26
  %555 = vperm.xlu0 %554, %v42
  %v556 = vpop.permute.xlu0 %555
  %557 = vset.pattern.permute.xlu0 26
  %558 = vperm.xlu0 %557, %v43
  %v559 = vpop.permute.xlu0 %558
  %vm560 = vcmp.eq.s32.totalorder %v556, 1
  %vm561 = vcmp.eq.s32.totalorder %v559, 1
  %v562 = vlaneseq
  %v563 = vshrl.u32 %v562, 7
  %v564 = vsub.s32 2, %v563
  %v565 = vrot.slane %v139, %v564
  %v566 = vsel %vm560, %v565, 1.0
  %v567 = vsel %vm561, %v565, 1.0
  %v568 = vmul.f32 %v552, %v566
  %v569 = vmul.f32 %v553, %v567
  %570 = vset.pattern.permute.xlu0 27
  %571 = vperm.xlu0 %570, %v42
  %v572 = vpop.permute.xlu0 %571
  %573 = vset.pattern.permute.xlu0 27
  %574 = vperm.xlu0 %573, %v43
  %v575 = vpop.permute.xlu0 %574
  %vm576 = vcmp.eq.s32.totalorder %v572, 1
  %vm577 = vcmp.eq.s32.totalorder %v575, 1
  %v578 = vlaneseq
  %v579 = vshrl.u32 %v578, 7
  %v580 = vsub.s32 3, %v579
  %v581 = vrot.slane %v139, %v580
  %v582 = vsel %vm576, %v581, 1.0
  %v583 = vsel %vm577, %v581, 1.0
  %v584 = vmul.f32 %v568, %v582
  %v585 = vmul.f32 %v569, %v583
  %586 = vset.pattern.permute.xlu0 28
  %587 = vperm.xlu0 %586, %v42
  %v588 = vpop.permute.xlu0 %587
  %589 = vset.pattern.permute.xlu0 28
  %590 = vperm.xlu0 %589, %v43
  %v591 = vpop.permute.xlu0 %590
  %vm592 = vcmp.eq.s32.totalorder %v588, 1
  %vm593 = vcmp.eq.s32.totalorder %v591, 1
  %v594 = vlaneseq
  %v595 = vshrl.u32 %v594, 7
  %v596 = vsub.s32 4, %v595
  %v597 = vrot.slane %v139, %v596
  %v598 = vsel %vm592, %v597, 1.0
  %v599 = vsel %vm593, %v597, 1.0
  %v600 = vmul.f32 %v584, %v598
  %v601 = vmul.f32 %v585, %v599
  %602 = vset.pattern.permute.xlu0 29
  %603 = vperm.xlu0 %602, %v42
  %v604 = vpop.permute.xlu0 %603
  %605 = vset.pattern.permute.xlu0 29
  %606 = vperm.xlu0 %605, %v43
  %v607 = vpop.permute.xlu0 %606
  %vm608 = vcmp.eq.s32.totalorder %v604, 1
  %vm609 = vcmp.eq.s32.totalorder %v607, 1
  %v610 = vlaneseq
  %v611 = vshrl.u32 %v610, 7
  %v612 = vsub.s32 5, %v611
  %v613 = vrot.slane %v139, %v612
  %v614 = vsel %vm608, %v613, 1.0
  %v615 = vsel %vm609, %v613, 1.0
  %v616 = vmul.f32 %v600, %v614
  %v617 = vmul.f32 %v601, %v615
  %618 = vset.pattern.permute.xlu0 30
  %619 = vperm.xlu0 %618, %v42
  %v620 = vpop.permute.xlu0 %619
  %621 = vset.pattern.permute.xlu0 30
  %622 = vperm.xlu0 %621, %v43
  %v623 = vpop.permute.xlu0 %622
  %vm624 = vcmp.eq.s32.totalorder %v620, 1
  %vm625 = vcmp.eq.s32.totalorder %v623, 1
  %v626 = vlaneseq
  %v627 = vshrl.u32 %v626, 7
  %v628 = vsub.s32 6, %v627
  %v629 = vrot.slane %v139, %v628
  %v630 = vsel %vm624, %v629, 1.0
  %v631 = vsel %vm625, %v629, 1.0
  %v632 = vmul.f32 %v616, %v630
  %v633 = vmul.f32 %v617, %v631
  %634 = vset.pattern.permute.xlu0 31
  %635 = vperm.xlu0 %634, %v42
  %v636 = vpop.permute.xlu0 %635
  %637 = vset.pattern.permute.xlu0 31
  %638 = vperm.xlu0 %637, %v43
  %v639 = vpop.permute.xlu0 %638
  %vm640 = vcmp.eq.s32.totalorder %v636, 1
  %vm641 = vcmp.eq.s32.totalorder %v639, 1
  %v642 = vlaneseq
  %v643 = vshrl.u32 %v642, 7
  %v644 = vsub.s32 7, %v643
  %v645 = vrot.slane %v139, %v644
  %v646 = vsel %vm640, %v645, 1.0
  %v647 = vsel %vm641, %v645, 1.0
  %v648 = vmul.f32 %v632, %v646
  %v649 = vmul.f32 %v633, %v647
  %v650 = vld [vmem:[%s4] sm:$0xff]
  %v651 = vld [vmem:[%s4 + $0x8] sm:$0xff]
  %v652 = vmul.f32 %v650, %v648
  %v653 = vmul.f32 %v651, %v649
  %vm654 = vcmask 130048
  %655 = vst.msk [vmem:[%s4] sm:$0xff] %vm654, %v652
  %656 = vst.msk [vmem:[%s4 + $0x8] sm:$0xff] %vm654, %v653
  // Predicated region
  $region18: #{gcn_conv_forward.4} parent=0 // pred_check
    _
  $region19: #{gcn_conv_forward.4} parent=0 // pred_check_branch
    %658 = sbr.rel (0) target = $region21
  $region20: #{gcn_conv_forward.4} parent=0 // pred_region
    _
  $region21: #{gcn_conv_forward.4} parent=0 // pred_fallthru
    _
  // Predicated region
  $region22: #{gcn_conv_forward.4} parent=0 // pred_check
    _
  $region23: #{gcn_conv_forward.4} parent=0 // pred_check_branch
    %660 = sbr.rel (0) target = $region25
  $region24: #{gcn_conv_forward.4} parent=0 // pred_region
    _
  $region25: #{gcn_conv_forward.4} parent=0 // pred_fallthru
    _
  // Predicated region
  $region26: #{gcn_conv_forward.4} parent=0 // pred_check
    _
  $region27: #{gcn_conv_forward.4} parent=0 // pred_check_branch
    %662 = sbr.rel (0) target = $region29
  $region28: #{gcn_conv_forward.4} parent=0 // pred_region
    _
  $region29: #{gcn_conv_forward.4} parent=0 // pred_fallthru
    _
  // Predicated region
  $region30: #{gcn_conv_forward.4} parent=0 // pred_check
    _
  $region31: #{gcn_conv_forward.4} parent=0 // pred_check_branch
    %664 = sbr.rel (0) target = $region33
  $region32: #{gcn_conv_forward.4} parent=0 // pred_region
    _
  $region33: #{gcn_conv_forward.4} parent=0 // pred_fallthru
    _

</llo_original>
